<compile_context>
chip_gen: v7x
topology: tpu7x:2x2x1
jax: 0.10.0
libtpu: 0.0.40
codegen_flags: <defaults>
</compile_context>

<pallas_src>
import math

import numpy as np
import jax
import jax.numpy as jnp
from jax import lax
from jax.experimental import pallas as pl
from jax.experimental.pallas import tpu as pltpu


def _round_up(x, m):
    return ((x + m - 1) // m) * m


# ----------------------------------------------------------------------------
# Pass 1: K / V projection -> head-major (H, N, d_head), once per token
# ----------------------------------------------------------------------------
def _proj_kv_kernel(xk_ref, xv_ref, wk_ref, bk_ref, wv_ref, bv_ref, kh_ref, vh_ref):
    f32 = jnp.float32
    n_heads, tkv, d_head = kh_ref.shape
    k = jnp.dot(xk_ref[...], wk_ref[...], preferred_element_type=f32) + bk_ref[...]
    v = jnp.dot(xv_ref[...], wv_ref[...], preferred_element_type=f32) + bv_ref[...]
    # (tkv, d) -> head-major (H, tkv, d_head): done once per token here instead of
    # once per (query-tile, kv-tile) step inside the attention kernel.
    kh_ref[...] = jnp.transpose(k.reshape(tkv, n_heads, d_head), (1, 0, 2)).astype(kh_ref.dtype)
    vh_ref[...] = jnp.transpose(v.reshape(tkv, n_heads, d_head), (1, 0, 2)).astype(vh_ref.dtype)


# ----------------------------------------------------------------------------
# Pass 2: flash-style masked attention + output projection
# ----------------------------------------------------------------------------
def _intra_attn_kernel(q_ref, k_ref, v_ref, left_ref, right_ref, kvalid_ref,
                       wo_ref, bo_ref, o_ref, m_scratch, l_scratch, acc_scratch):
    f32 = jnp.float32
    cd = k_ref.dtype                              # MXU compute dtype (f32 or bf16)
    n_heads, tq, d_head = q_ref.shape
    tkv = k_ref.shape[1]

    ki = pl.program_id(1)
    nkv = pl.num_programs(1)

    # ---- init accumulators once per query tile ----
    @pl.when(ki == 0)
    def _():
        m_scratch[...] = jnp.full(m_scratch.shape, -1e30, f32)
        l_scratch[...] = jnp.zeros(l_scratch.shape, f32)
        acc_scratch[...] = jnp.zeros(acc_scratch.shape, f32)

    # ---- block-diagonal chunk mask rebuilt in-kernel (O(tq + tkv) metadata) ----
    col = ki * tkv + lax.broadcasted_iota(jnp.int32, (tq, tkv), 1)
    keep = (col >= left_ref[...]) & (col < right_ref[...]) & (kvalid_ref[...] != 0)
    bias = jnp.where(keep, 0.0, -10000.0).astype(f32)              # (tq, tkv)

    # ---- scores (scale folded into Q) + online-softmax update ----
    s = jnp.einsum('hqd,hkd->hqk', q_ref[...], k_ref[...],
                   preferred_element_type=f32) + bias[None]        # (H, tq, tkv)
    m_prev = m_scratch[...]
    m_new = jnp.maximum(m_prev, jnp.max(s, axis=-1, keepdims=True))
    alpha = jnp.exp(m_prev - m_new)
    p = jnp.exp(s - m_new)
    l_scratch[...] = alpha * l_scratch[...] + jnp.sum(p, axis=-1, keepdims=True)
    acc_scratch[...] = alpha * acc_scratch[...] + jnp.einsum(
        'hqk,hkd->hqd', p.astype(cd), v_ref[...], preferred_element_type=f32)
    m_scratch[...] = m_new
    # TODO(synk): dropout on the attention probs is identity in eval mode; not applied.

    # ---- finalize: normalize, one (H,tq,dh)->(tq,d) relayout, full-depth out proj ----
    @pl.when(ki == nkv - 1)
    def _():
        # Exact reciprocal: finalize is cold (1 of nkv steps) and keeps fp32 validation tight.
        ctx = acc_scratch[...] * pl.reciprocal(l_scratch[...], approx=False)   # (H, tq, dh)
        ctx2 = jnp.transpose(ctx, (1, 0, 2)).reshape(tq, n_heads * d_head)     # (tq, d)
        o_ref[...] = (jnp.dot(ctx2.astype(cd), wo_ref[...],
                              preferred_element_type=f32) + bo_ref[...]).astype(o_ref.dtype)


# ----------------------------------------------------------------------------
# Tile / VMEM sizing helpers
# ----------------------------------------------------------------------------
def _pick_tiles(f, n_tokens, n_heads):
    # Query tile: multiple of 8 sublanes; prefer >=2 grid steps on the "parallel"
    # axis so v7x's two TensorCores can shard it.
    tq = None
    for c in (256, 128, 64, 32, 16, 8):
        if f >= 2 * c:
            tq = c
            break
    if tq is None:
        tq = min(256, _round_up(f, 8))

    # KV tile: whole (padded) token axis if it fits 128 lanes; otherwise a multiple
    # of 128 bounded so the fp32 (H, tq, tkv) score tile stays ~<=4 MiB (keeps the
    # inner working set well inside v7x's 64 MiB VMEM while still amortizing
    # per-grid-step overhead on v5e/v6e).
    n8 = _round_up(n_tokens, 8)
    if n8 <= 128:
        tkv = n8
    else:
        tkv = 128
        for c in (2048, 1024, 512, 256, 128):
            if c <= n8 and n_heads * tq * c * 4 <= (4 << 20):
                tkv = c
                break
    return tq, tkv


def _vmem_limit(est_bytes):
    # Derived from actual buffer sizes, with 2x headroom; clamped to [32, 64] MiB
    # so it is valid on v7x (64 MiB physical per TC) and a no-op for small shapes.
    return int(min(max(2 * est_bytes, 32 * 1024 * 1024), 64 * 1024 * 1024))


# ----------------------------------------------------------------------------
# Wrapper
# ----------------------------------------------------------------------------
def intra_feature_attention_pallas(x_qk, x_v, query_mask, input_ids, params,
                                   n_heads, pad_token_id=1,
                                   compute_dtype=jnp.bfloat16):
    """Pallas implementation of IntraFeatureAttention.forward (eval mode)."""
    b, l, d = x_qk.shape
    assert d % n_heads == 0
    d_head = d // n_heads
    n_tokens = b * l
    cd = compute_dtype
    itemsize = jnp.dtype(cd).itemsize

    # Host-side (numpy, writable) chunk metadata -- no device syncs.
    query_mask = np.asarray(query_mask)
    input_ids = np.asarray(input_ids)
    query_idx = np.where(query_mask.reshape(-1) == 1)[0].astype(np.int32)
    f = int(query_idx.shape[0])
    assert f % b == 0

    tq, tkv = _pick_tiles(f, n_tokens, n_heads)
    f_pad = _round_up(f, tq)
    n_pad = _round_up(n_tokens, tkv)
    n_kv_steps = n_pad // tkv

    attn_thresh = np.concatenate([query_idx, np.array([n_tokens], np.int32)])
    left_np = np.zeros((f_pad, 1), np.int32)        # padded query rows: empty chunk
    right_np = np.zeros((f_pad, 1), np.int32)
    left_np[:f, 0] = attn_thresh[:-1]
    right_np[:f, 0] = attn_thresh[1:]
    kvalid_np = np.zeros((1, n_pad), np.int32)      # padded keys: invalid
    kvalid_np[0, :n_tokens] = (input_ids.reshape(-1) != pad_token_id).astype(np.int32)

    x_qk_flat = x_qk.reshape(n_tokens, d)
    x_v_flat = x_v.reshape(n_tokens, d)
    if n_pad > n_tokens:
        pad = ((0, n_pad - n_tokens), (0, 0))
        x_qk_p = jnp.pad(x_qk_flat, pad)
        x_v_p = jnp.pad(x_v_flat, pad)
    else:
        x_qk_p, x_v_p = x_qk_flat, x_v_flat

    # ---- Q projection: tiny (f, d) @ (d, d) in XLA; scale + bias folded in,
    # laid out head-major once (hoisted out of the attention kernel). ----
    scale = 1.0 / (math.sqrt(d_head) + 1e-8)        # matches reference scaling
    query = x_qk_flat[query_idx]                    # static-index gather (glue)
    q = (query @ params["wq"] + params["bq"].reshape(1, d)) * scale
    q_h = jnp.transpose(q.reshape(f, n_heads, d_head), (1, 0, 2))
    if f_pad > f:
        q_h = jnp.pad(q_h, ((0, 0), (0, f_pad - f), (0, 0)))
    q_h = q_h.astype(cd)

    # ---- Pass 1: K/V projection to head-major HBM, once per token ----
    wk = params["wk"].astype(cd)
    wv = params["wv"].astype(cd)
    bk = params["bk"].reshape(1, d).astype(jnp.float32)
    bv = params["bv"].reshape(1, d).astype(jnp.float32)

    proj_est = (4 * tkv * d * itemsize * 2          # xk/xv in + kh/vh out (double-buffered)
                + 2 * d * d * itemsize * 2          # W_k, W_v resident
                + 2 * tkv * d * 4)                  # fp32 matmul temporaries
    k_h, v_h = pl.pallas_call(
        _proj_kv_kernel,
        out_shape=(jax.ShapeDtypeStruct((n_heads, n_pad, d_head), cd),
                   jax.ShapeDtypeStruct((n_heads, n_pad, d_head), cd)),
        grid_spec=pltpu.PrefetchScalarGridSpec(
            num_scalar_prefetch=0,
            grid=(n_kv_steps,),
            in_specs=[
                pl.BlockSpec((tkv, d), lambda i: (i, 0)),      # x_qk tokens
                pl.BlockSpec((tkv, d), lambda i: (i, 0)),      # x_v tokens
                pl.BlockSpec((d, d), lambda i: (0, 0)),        # W_k
                pl.BlockSpec((1, d), lambda i: (0, 0)),        # b_k
                pl.BlockSpec((d, d), lambda i: (0, 0)),        # W_v
                pl.BlockSpec((1, d), lambda i: (0, 0)),        # b_v
            ],
            out_specs=(pl.BlockSpec((n_heads, tkv, d_head), lambda i: (0, i, 0)),
                       pl.BlockSpec((n_heads, tkv, d_head), lambda i: (0, i, 0))),
        ),
        compiler_params=pltpu.CompilerParams(
            dimension_semantics=("parallel",),
            vmem_limit_bytes=_vmem_limit(proj_est)),
    )(x_qk_p.astype(cd), x_v_p.astype(cd), wk, bk, wv, bv)

    # ---- Pass 2: attention + output projection ----
    wo = params["wo"].astype(cd)
    bo = params["bo"].reshape(1, d).astype(jnp.float32)

    attn_est = (tq * d * itemsize * 2               # q tile
                + 2 * tkv * d * itemsize * 2        # k/v tiles (double-buffered)
                + d * d * itemsize * 2              # W_out
                + tq * d * 4 * 2                    # output tile
                + n_heads * tq * (d_head + 2) * 4   # m/l/acc scratch
                + 2 * n_heads * tq * tkv * 4        # s / p fp32 intermediates
                + 2 * tq * tkv * 4)                 # mask temporaries
    out = pl.pallas_call(
        _intra_attn_kernel,
        out_shape=jax.ShapeDtypeStruct((f_pad, d), jnp.float32),
        grid_spec=pltpu.PrefetchScalarGridSpec(
            num_scalar_prefetch=0,
            grid=(f_pad // tq, n_kv_steps),
            in_specs=[
                pl.BlockSpec((n_heads, tq, d_head), lambda qi, ki: (0, qi, 0)),   # Q (head-major)
                pl.BlockSpec((n_heads, tkv, d_head), lambda qi, ki: (0, ki, 0)),  # K (head-major)
                pl.BlockSpec((n_heads, tkv, d_head), lambda qi, ki: (0, ki, 0)),  # V (head-major)
                pl.BlockSpec((tq, 1), lambda qi, ki: (qi, 0)),                    # chunk left
                pl.BlockSpec((tq, 1), lambda qi, ki: (qi, 0)),                    # chunk right
                pl.BlockSpec((1, tkv), lambda qi, ki: (0, ki)),                   # key pad validity
                pl.BlockSpec((d, d), lambda qi, ki: (0, 0)),                      # W_out
                pl.BlockSpec((1, d), lambda qi, ki: (0, 0)),                      # b_out
            ],
            out_specs=pl.BlockSpec((tq, d), lambda qi, ki: (qi, 0)),
            scratch_shapes=[
                pltpu.VMEM((n_heads, tq, 1), jnp.float32),        # running max
                pltpu.VMEM((n_heads, tq, 1), jnp.float32),        # running denom
                pltpu.VMEM((n_heads, tq, d_head), jnp.float32),   # ctx accumulator
            ]),
        compiler_params=pltpu.CompilerParams(
            dimension_semantics=("parallel", "arbitrary"),
            vmem_limit_bytes=_vmem_limit(attn_est)),
    )(q_h, k_h, v_h, jnp.asarray(left_np), jnp.asarray(right_np),
      jnp.asarray(kvalid_np), wo, bo)

    return out[:f].reshape(b, f // b, d)


# ----------------------------------------------------------------------------
# Pure-JAX reference (mirrors the PyTorch forward) for validation
# ----------------------------------------------------------------------------
def intra_feature_attention_ref(x_qk, x_v, query_mask, input_ids, params,
                                n_heads, pad_token_id=1):
    b, l, d = x_qk.shape
    d_head = d // n_heads
    n_tokens = b * l

    query_mask = np.asarray(query_mask).reshape(-1)
    ids = np.asarray(input_ids).reshape(-1)
    query_idx = np.where(query_mask == 1)[0]
    f = int(query_idx.shape[0])
    attn_thresh = np.concatenate([query_idx, np.array([n_tokens])])
    left, right = attn_thresh[:-1][:, None], attn_thresh[1:][:, None]
    feat_ids = np.arange(n_tokens)[None, :]
    mask = (feat_ids >= left) & (feat_ids < right) & (ids[None, :] != pad_token_id)
    mask_bias = jnp.asarray((1.0 - mask.astype(np.float32)) * -10000.0)

    x_qk_flat = x_qk.reshape(n_tokens, d)
    x_v_flat = x_v.reshape(n_tokens, d)
    query = x_qk_flat[query_idx]

    q = query @ params["wq"] + params["bq"]
    k = x_qk_flat @ params["wk"] + params["bk"]
    v = x_v_flat @ params["wv"] + params["bv"]

    q = q.reshape(f, n_heads, d_head).transpose(1, 0, 2)
    k = k.reshape(n_tokens, n_heads, d_head).transpose(1, 0, 2)
    v = v.reshape(n_tokens, n_heads, d_head).transpose(1, 0, 2)

    scores = jnp.einsum("hfd,hnd->hfn", q, k) / (math.sqrt(d_head) + 1e-8)
    scores = scores + mask_bias[None]
    attn = jax.nn.softmax(scores, axis=-1)
    ctx = jnp.einsum("hfn,hnd->hfd", attn, v)
    ctx = ctx.transpose(1, 0, 2).reshape(f, d)
    out = ctx @ params["wo"] + params["bo"]
    return out.reshape(b, f // b, d)


# ----------------------------------------------------------------------------
# Main
# ----------------------------------------------------------------------------
if __name__ == "__main__":
    b, l, d = 2, 16, 32
    n_heads = 4
    pad_token_id = 1

    key = jax.random.PRNGKey(0)
    k_xqk, k_xv, kq, kk, kv, ko = jax.random.split(key, 6)

    x_qk = jax.random.normal(k_xqk, (b, l, d), dtype=jnp.float32)
    x_v = jax.random.normal(k_xv, (b, l, d), dtype=jnp.float32)

    # Host-side (numpy, writable) metadata: chunk starts + token ids with pads.
    query_mask = np.zeros((b, l), dtype=np.int32)
    query_mask[:, [0, 4, 8, 12]] = 1                  # 4 feature chunks / row -> f = 8

    rng = np.random.default_rng(0)
    input_ids = rng.integers(2, 30, size=(b, l)).astype(np.int32)
    input_ids[0, 14:] = pad_token_id
    input_ids[1, 15:] = pad_token_id

    # Deterministic init (weights ~ N(0, 0.02), biases zero as in the module).
    params = {
        "wq": 0.02 * jax.random.normal(kq, (d, d), dtype=jnp.float32),
        "wk": 0.02 * jax.random.normal(kk, (d, d), dtype=jnp.float32),
        "wv": 0.02 * jax.random.normal(kv, (d, d), dtype=jnp.float32),
        "wo": 0.02 * jax.random.normal(ko, (d, d), dtype=jnp.float32),
        "bq": jnp.zeros((1, d), jnp.float32),
        "bk": jnp.zeros((1, d), jnp.float32),
        "bv": jnp.zeros((1, d), jnp.float32),
        "bo": jnp.zeros((1, d), jnp.float32),
    }

    ref = jax.block_until_ready(intra_feature_attention_ref(
        x_qk, x_v, query_mask, input_ids, params, n_heads, pad_token_id))

    # fp32 MXU path (tight check against the reference).
    out = jax.block_until_ready(intra_feature_attention_pallas(
        x_qk, x_v, query_mask, input_ids, params, n_heads, pad_token_id,
        compute_dtype=jnp.float32))
    assert out.shape == (b, 4, d), out.shape
    np.testing.assert_allclose(np.asarray(out), np.asarray(ref),
                               rtol=1e-3, atol=5e-4)

    # bf16 MXU path (default perf mode: bf16 matmul inputs, fp32 accumulation/softmax).
    out_bf16 = jax.block_until_ready(intra_feature_attention_pallas(
        x_qk, x_v, query_mask, input_ids, params, n_heads, pad_token_id,
        compute_dtype=jnp.bfloat16))
    np.testing.assert_allclose(np.asarray(out_bf16), np.asarray(ref),
                               rtol=5e-2, atol=5e-3)

    print("KERNEL_OK")
</pallas_src>

<mosaic_0001>
module attributes {stable_mosaic.version = 11 : i64} {
  func.func @_proj_kv_kernel(%arg0: i32, %arg1: memref<32x32xf32, #tpu.memory_space<vmem>>, %arg2: memref<32x32xf32, #tpu.memory_space<vmem>>, %arg3: memref<32x32xf32, #tpu.memory_space<vmem>>, %arg4: memref<1x32xf32, #tpu.memory_space<vmem>>, %arg5: memref<32x32xf32, #tpu.memory_space<vmem>>, %arg6: memref<1x32xf32, #tpu.memory_space<vmem>>, %arg7: memref<4x32x8xf32, #tpu.memory_space<vmem>>, %arg8: memref<4x32x8xf32, #tpu.memory_space<vmem>>) attributes {dimension_semantics = [#tpu.dimension_semantics<parallel>], iteration_bounds = array<i64: 1>, scalar_prefetch = 0 : i64, scratch_operands = 0 : i64, tpu.core_type = #tpu.core_type<tc>, window_params = [{transform_indices = @transform_0, window_bounds = array<i64: 32, 32>}, {transform_indices = @transform_1, window_bounds = array<i64: 32, 32>}, {pipeline_mode = #tpu.pipeline_mode<synchronous>, transform_indices = @transform_2, window_bounds = array<i64: 32, 32>}, {pipeline_mode = #tpu.pipeline_mode<synchronous>, transform_indices = @transform_3, window_bounds = array<i64: 1, 32>}, {pipeline_mode = #tpu.pipeline_mode<synchronous>, transform_indices = @transform_4, window_bounds = array<i64: 32, 32>}, {pipeline_mode = #tpu.pipeline_mode<synchronous>, transform_indices = @transform_5, window_bounds = array<i64: 1, 32>}, {transform_indices = @transform_6, window_bounds = array<i64: 4, 32, 8>}, {transform_indices = @transform_7, window_bounds = array<i64: 4, 32, 8>}]} {
    %c0 = arith.constant 0 : index
    %c0_0 = arith.constant 0 : index
    %0 = vector.load %arg1[%c0, %c0_0] : memref<32x32xf32, #tpu.memory_space<vmem>>, vector<32x32xf32>
    %c0_1 = arith.constant 0 : index
    %c0_2 = arith.constant 0 : index
    %1 = vector.load %arg3[%c0_1, %c0_2] : memref<32x32xf32, #tpu.memory_space<vmem>>, vector<32x32xf32>
    %cst = arith.constant dense<0.000000e+00> : vector<32x32xf32>
    %2 = tpu.matmul %0, %1, %cst {dimension_numbers = #tpu.dot_dimension_numbers<[1], [0], [0], [1], [0, 0, 1, 1], [], []>} : vector<32x32xf32>, vector<32x32xf32>, vector<32x32xf32> -> vector<32x32xf32>
    %c0_3 = arith.constant 0 : index
    %c0_4 = arith.constant 0 : index
    %3 = vector.load %arg4[%c0_3, %c0_4] : memref<1x32xf32, #tpu.memory_space<vmem>>, vector<1x32xf32>
    %4 = vector.broadcast %3 : vector<1x32xf32> to vector<32x32xf32>
    %5 = arith.addf %2, %4 : vector<32x32xf32>
    %c0_5 = arith.constant 0 : index
    %c0_6 = arith.constant 0 : index
    %6 = vector.load %arg2[%c0_5, %c0_6] : memref<32x32xf32, #tpu.memory_space<vmem>>, vector<32x32xf32>
    %c0_7 = arith.constant 0 : index
    %c0_8 = arith.constant 0 : index
    %7 = vector.load %arg5[%c0_7, %c0_8] : memref<32x32xf32, #tpu.memory_space<vmem>>, vector<32x32xf32>
    %cst_9 = arith.constant dense<0.000000e+00> : vector<32x32xf32>
    %8 = tpu.matmul %6, %7, %cst_9 {dimension_numbers = #tpu.dot_dimension_numbers<[1], [0], [0], [1], [0, 0, 1, 1], [], []>} : vector<32x32xf32>, vector<32x32xf32>, vector<32x32xf32> -> vector<32x32xf32>
    %c0_10 = arith.constant 0 : index
    %c0_11 = arith.constant 0 : index
    %9 = vector.load %arg6[%c0_10, %c0_11] : memref<1x32xf32, #tpu.memory_space<vmem>>, vector<1x32xf32>
    %10 = vector.broadcast %9 : vector<1x32xf32> to vector<32x32xf32>
    %11 = arith.addf %8, %10 : vector<32x32xf32>
    %12 = vector.shape_cast %5 : vector<32x32xf32> to vector<32x4x8xf32>
    %13 = tpu.transpose %12, [1, 0, 2] : vector<32x4x8xf32> -> vector<4x32x8xf32>
    %c0_12 = arith.constant 0 : index
    %c0_13 = arith.constant 0 : index
    %c0_14 = arith.constant 0 : index
    %14 = vector.load %arg7[%c0_12, %c0_13, %c0_14] : memref<4x32x8xf32, #tpu.memory_space<vmem>>, vector<4x32x8xf32>
    tpu.vector_store %arg7[%c0_12, %c0_13, %c0_14], %13 {strides = array<i32>} : memref<4x32x8xf32, #tpu.memory_space<vmem>>, vector<4x32x8xf32>,
    %15 = vector.shape_cast %11 : vector<32x32xf32> to vector<32x4x8xf32>
    %16 = tpu.transpose %15, [1, 0, 2] : vector<32x4x8xf32> -> vector<4x32x8xf32>
    %c0_15 = arith.constant 0 : index
    %c0_16 = arith.constant 0 : index
    %c0_17 = arith.constant 0 : index
    %17 = vector.load %arg8[%c0_15, %c0_16, %c0_17] : memref<4x32x8xf32, #tpu.memory_space<vmem>>, vector<4x32x8xf32>
    tpu.vector_store %arg8[%c0_15, %c0_16, %c0_17], %16 {strides = array<i32>} : memref<4x32x8xf32, #tpu.memory_space<vmem>>, vector<4x32x8xf32>,
    return
  }
  func.func @transform_0(%arg0: i32) -> (i32, i32) {
    %c0_i32 = arith.constant 0 : i32
    %c0_i32_0 = arith.constant 0 : i32
    return %arg0, %c0_i32 : i32, i32
  }
  func.func @transform_1(%arg0: i32) -> (i32, i32) {
    %c0_i32 = arith.constant 0 : i32
    %c0_i32_0 = arith.constant 0 : i32
    return %arg0, %c0_i32 : i32, i32
  }
  func.func @transform_2(%arg0: i32) -> (i32, i32) {
    %c0_i32 = arith.constant 0 : i32
    %c0_i32_0 = arith.constant 0 : i32
    %c0_i32_1 = arith.constant 0 : i32
    return %c0_i32, %c0_i32_0 : i32, i32
  }
  func.func @transform_3(%arg0: i32) -> (i32, i32) {
    %c0_i32 = arith.constant 0 : i32
    %c0_i32_0 = arith.constant 0 : i32
    %c0_i32_1 = arith.constant 0 : i32
    return %c0_i32, %c0_i32_0 : i32, i32
  }
  func.func @transform_4(%arg0: i32) -> (i32, i32) {
    %c0_i32 = arith.constant 0 : i32
    %c0_i32_0 = arith.constant 0 : i32
    %c0_i32_1 = arith.constant 0 : i32
    return %c0_i32, %c0_i32_0 : i32, i32
  }
  func.func @transform_5(%arg0: i32) -> (i32, i32) {
    %c0_i32 = arith.constant 0 : i32
    %c0_i32_0 = arith.constant 0 : i32
    %c0_i32_1 = arith.constant 0 : i32
    return %c0_i32, %c0_i32_0 : i32, i32
  }
  func.func @transform_6(%arg0: i32) -> (i32, i32, i32) {
    %c0_i32 = arith.constant 0 : i32
    %c0_i32_0 = arith.constant 0 : i32
    %c0_i32_1 = arith.constant 0 : i32
    return %c0_i32, %arg0, %c0_i32_0 : i32, i32, i32
  }
  func.func @transform_7(%arg0: i32) -> (i32, i32, i32) {
    %c0_i32 = arith.constant 0 : i32
    %c0_i32_0 = arith.constant 0 : i32
    %c0_i32_1 = arith.constant 0 : i32
    return %c0_i32, %arg0, %c0_i32_0 : i32, i32, i32
  }
}

</mosaic_0001>

<llo_original>
// kernel: tpu_custom_call.1
$region0: #{tpu_custom_call.1}
  #allocation0 [shape = 'u32[]', space=smem, size = 0x4, offset = 0x4, fixed_abs, tag = 'smem constant byte address 0x4 - core index']
  #allocation1 [shape = 'u32[144,128]{1,0:T(1,128)}', space=vmem, size = 0x12000, scoped, tag = 'internal scratch']
  %s0 = inlined_call_operand.hbm [shape: f32[32,32], index: 0, kind: input, shape index: {}]
  %s1 = inlined_call_operand.hbm [shape: f32[32,32], index: 1, kind: input, shape index: {}]
  %s2 = inlined_call_operand.hbm [shape: f32[32,32], index: 2, kind: input, shape index: {}]
  %s3 = inlined_call_operand.vmem [shape: f32[1,32], index: 3, kind: input, shape index: {}]
  %s4 = inlined_call_operand.hbm [shape: f32[32,32], index: 4, kind: input, shape index: {}]
  %s5 = inlined_call_operand.vmem [shape: f32[1,32], index: 5, kind: input, shape index: {}]
  %s6 = inlined_call_operand.vmem [shape: f32[4,32,8], index: 6, kind: output, shape index: {0}]
  %s7 = inlined_call_operand.vmem [shape: f32[4,32,8], index: 7, kind: output, shape index: {1}]
  %8 = xla_tuple %s6, %s7
  %s9 = sld [smem:[#allocation0]]
  $region58: #{tpu_custom_call.1} parent=0
    _
  %s11 = ssub.s32 1, %s9
  %s12 = scalar_select 0, %s11, %s9
  $region1: #{tpu_custom_call.1} parent=0
    #allocation2 [shape = 'u8[16384]{0}', space=vmem, size = 0x4000, scoped, tag = 'input window, operand 0, single buffered']
    #allocation3 [shape = 's32[1]{0}', space=sflag, size = 0x4, scoped, tag = 'scoped memory for tpu_custom_call.1']
    #allocation4 [shape = 'u8[16384]{0}', space=vmem, size = 0x4000, scoped, tag = 'input window, operand 1, single buffered']
    #allocation5 [shape = 's32[1]{0}', space=sflag, size = 0x4, scoped, tag = 'scoped memory for tpu_custom_call.1']
    #allocation6 [shape = 'u8[16384]{0}', space=vmem, size = 0x4000, scoped, tag = 'input window, operand 2, single buffered']
    #allocation7 [shape = 'u8[16384]{0}', space=vmem, size = 0x4000, scoped, tag = 'input window, operand 4, single buffered']
    #allocation8 [shape = 's32[1]{0}', space=sflag, size = 0x4, scoped, tag = 'scoped memory for tpu_custom_call.1']
    %13 = vsyncpa [#allocation3], 0
    %14 = vsyncpa [#allocation5], 0
    %15 = vsyncpa [#allocation8], 0
    // Predicated region
    $region2: #{tpu_custom_call.1} parent=1 // pred_check
      _
    $region3: #{tpu_custom_call.1} parent=1 // pred_check_branch
      %17 = sbr.rel (0) target = $region5
    $region4: #{tpu_custom_call.1} parent=1 // pred_region
      %s19 = ssub.s32 512, 512
      %20 = vsyncadd [#allocation3], %s19
      %s21 = sshll.u32 [#allocation2], 4
      %s22 = int_to_ptr.vmem [resolvable:$true] %s21
      %27 = dma.hbm_to_vmem [thread:$0]  %s0, 512, %s22, [#allocation3], 128, 128, 8
    $region5: #{tpu_custom_call.1} parent=1 // pred_fallthru
      _
    // Predicated region
    $region6: #{tpu_custom_call.1} parent=1 // pred_check
      _
    $region7: #{tpu_custom_call.1} parent=1 // pred_check_branch
      %29 = sbr.rel (0) target = $region9
    $region8: #{tpu_custom_call.1} parent=1 // pred_region
      %s31 = ssub.s32 512, 512
      %32 = vsyncadd [#allocation5], %s31
      %s33 = sshll.u32 [#allocation4], 4
      %s34 = int_to_ptr.vmem [resolvable:$true] %s33
      %39 = dma.hbm_to_vmem [thread:$0]  %s1, 512, %s34, [#allocation5], 128, 128, 8
    $region9: #{tpu_custom_call.1} parent=1 // pred_fallthru
      _
    // Predicated region
    $region10: #{tpu_custom_call.1} parent=1 // pred_check
      _
    $region11: #{tpu_custom_call.1} parent=1 // pred_check_branch
      %41 = sbr.rel (0) target = $region13
    $region12: #{tpu_custom_call.1} parent=1 // pred_region
      %s43 = ssub.s32 512, 512
      %44 = vsyncadd [#allocation5], %s43
      %s45 = sshll.u32 [#allocation6], 4
      %s46 = int_to_ptr.vmem [resolvable:$true] %s45
      %51 = dma.hbm_to_vmem [thread:$0]  %s2, 512, %s46, [#allocation5], 128, 128, 8
    $region13: #{tpu_custom_call.1} parent=1 // pred_fallthru
      _
    // Predicated region
    $region14: #{tpu_custom_call.1} parent=1 // pred_check
      _
    $region15: #{tpu_custom_call.1} parent=1 // pred_check_branch
      %53 = sbr.rel (0) target = $region17
    $region16: #{tpu_custom_call.1} parent=1 // pred_region
      _
    $region17: #{tpu_custom_call.1} parent=1 // pred_fallthru
      _
    // Predicated region
    $region18: #{tpu_custom_call.1} parent=1 // pred_check
      _
    $region19: #{tpu_custom_call.1} parent=1 // pred_check_branch
      %55 = sbr.rel (0) target = $region21
    $region20: #{tpu_custom_call.1} parent=1 // pred_region
      %s57 = ssub.s32 512, 512
      %58 = vsyncadd [#allocation8], %s57
      %s59 = sshll.u32 [#allocation7], 4
      %s60 = int_to_ptr.vmem [resolvable:$true] %s59
      %65 = dma.hbm_to_vmem [thread:$0]  %s4, 512, %s60, [#allocation8], 128, 128, 8
    $region21: #{tpu_custom_call.1} parent=1 // pred_fallthru
      _
    // Predicated region
    $region22: #{tpu_custom_call.1} parent=1 // pred_check
      _
    $region23: #{tpu_custom_call.1} parent=1 // pred_check_branch
      %67 = sbr.rel (0) target = $region25
    $region24: #{tpu_custom_call.1} parent=1 // pred_region
      _
    $region25: #{tpu_custom_call.1} parent=1 // pred_fallthru
      _
    // Predicated region
    $region26: #{tpu_custom_call.1} parent=1 // pred_check
      _
    $region27: #{tpu_custom_call.1} parent=1 // pred_check_branch
      %69 = sbr.rel (0) target = $region29
    $region28: #{tpu_custom_call.1} parent=1 // pred_region
      %70 = dma.done [#allocation3], 512
    $region29: #{tpu_custom_call.1} parent=1 // pred_fallthru
      _
    // Predicated region
    $region30: #{tpu_custom_call.1} parent=1 // pred_check
      _
    $region31: #{tpu_custom_call.1} parent=1 // pred_check_branch
      %72 = sbr.rel (0) target = $region33
    $region32: #{tpu_custom_call.1} parent=1 // pred_region
      %73 = dma.done [#allocation5], 512
    $region33: #{tpu_custom_call.1} parent=1 // pred_fallthru
      _
    // Predicated region
    $region34: #{tpu_custom_call.1} parent=1 // pred_check
      _
    $region35: #{tpu_custom_call.1} parent=1 // pred_check_branch
      %75 = sbr.rel (0) target = $region37
    $region36: #{tpu_custom_call.1} parent=1 // pred_region
      %76 = dma.done [#allocation5], 512
    $region37: #{tpu_custom_call.1} parent=1 // pred_fallthru
      _
    // Predicated region
    $region38: #{tpu_custom_call.1} parent=1 // pred_check
      _
    $region39: #{tpu_custom_call.1} parent=1 // pred_check_branch
      %78 = sbr.rel (0) target = $region41
    $region40: #{tpu_custom_call.1} parent=1 // pred_region
      %79 = dma.done [#allocation8], 512
    $region41: #{tpu_custom_call.1} parent=1 // pred_fallthru
      _
    %v80 = vld [vmem:[#allocation2] sm:$0xff]
    %v81 = vld [vmem:[#allocation2 + $0x8] sm:$0xff]
    %v82 = vld [vmem:[#allocation2 + $0x10] sm:$0xff]
    %v83 = vld [vmem:[#allocation2 + $0x18] sm:$0xff]
    %v84 = vld [vmem:[#allocation6] sm:$0xff]
    %v85 = vld [vmem:[#allocation6 + $0x8] sm:$0xff]
    %v86 = vld [vmem:[#allocation6 + $0x10] sm:$0xff]
    %v87 = vld [vmem:[#allocation6 + $0x18] sm:$0xff]
    %v88 = vld [vmem:[%s3] sm:$0x1]
    %v90 = vlaneseq
    %v91 = vshrl.u32 %v90, 7
    %v92 = vsub.s32 0, %v91
    %v93 = vrot.slane %v88, %v92
    %vm95 = vcmask 261120
    %v97 = vsel %vm95, %v80, 0
    %v100 = vsel %vm95, %v81, 0
    %v103 = vsel %vm95, %v82, 0
    %v106 = vsel %vm95, %v83, 0
    %108 = vmatprep.subr.mxu0 0.0
    %109 = vmatpush1.msra.mxu0 %v84
    %110 = vmatprep.subr.mxu0 0.0
    %111 = vmatpush1.msra.mxu0 %v85
    %112 = vmatprep.subr.mxu0 0.0
    %113 = vmatpush1.msra.mxu0 %v86
    %114 = vmatprep.subr.mxu0 0.0
    %115 = vmatpush1.msra.mxu0 %v87
    %116 = vmatprep.subr.mxu0 0.0
    %117 = vmatpush1.msra.mxu0 0.0
    %118 = vmatprep.subr.mxu0 0.0
    %119 = vmatpush1.msra.mxu0 0.0
    %120 = vmatprep.subr.mxu0 0.0
    %121 = vmatpush1.msra.mxu0 0.0
    %122 = vmatprep.subr.mxu0 0.0
    %123 = vmatpush1.msra.mxu0 0.0
    %124 = vmatprep.subr.mxu0 0.0
    %125 = vmatpush1.msra.mxu0 0.0
    %126 = vmatprep.subr.mxu0 0.0
    %127 = vmatpush1.msra.mxu0 0.0
    %128 = vmatprep.subr.mxu0 0.0
    %129 = vmatpush1.msra.mxu0 0.0
    %130 = vmatprep.subr.mxu0 0.0
    %131 = vmatpush1.msra.mxu0 0.0
    %132 = vmatprep.subr.mxu0 0.0
    %133 = vmatpush1.msra.mxu0 0.0
    %134 = vmatprep.subr.mxu0 0.0
    %135 = vmatpush1.msra.mxu0 0.0
    %136 = vmatprep.subr.mxu0 0.0
    %137 = vmatpush1.msra.mxu0 0.0
    %138 = vmatprep.subr.mxu0 0.0
    %139 = vmatpush1.msra.mxu0 0.0
    %140 = vmatprep.subr.mxu0 0.0
    %141 = vmatpush1.msra.mxu0 0.0
    %142 = vmatprep.subr.mxu0 0.0
    %143 = vmatpush1.msra.mxu0 0.0
    %144 = vmatprep.subr.mxu0 0.0
    %145 = vmatpush1.msra.mxu0 0.0
    %146 = vmatprep.subr.mxu0 0.0
    %147 = vmatpush1.msra.mxu0 0.0
    %148 = vmatprep.subr.mxu0 0.0
    %149 = vmatpush1.msra.mxu0 0.0
    %150 = vmatprep.subr.mxu0 0.0
    %151 = vmatpush1.msra.mxu0 0.0
    %152 = vmatprep.subr.mxu0 0.0
    %153 = vmatpush1.msra.mxu0 0.0
    %154 = vmatprep.subr.mxu0 0.0
    %155 = vmatpush1.msra.mxu0 0.0
    %156 = vmatprep.subr.mxu0 0.0
    %157 = vmatpush1.msra.mxu0 0.0
    %158 = vmatprep.subr.mxu0 0.0
    %159 = vmatpush1.msra.mxu0 0.0
    %160 = vmatprep.subr.mxu0 0.0
    %161 = vmatpush1.msra.mxu0 0.0
    %162 = vmatprep.subr.mxu0 0.0
    %163 = vmatpush1.msra.mxu0 0.0
    %164 = vmatprep.subr.mxu0 0.0
    %165 = vmatpush1.msra.mxu0 0.0
    %166 = vmatprep.subr.mxu0 0.0
    %167 = vmatpush1.msra.mxu0 0.0
    %168 = vmatprep.subr.mxu0 0.0
    %169 = vmatpush1.msra.mxu0 0.0
    %170 = vmatprep.subr.mxu0 0.0
    %171 = vmatpush1.msra.mxu0 0.0
    %172 = vmatprep.mubr.f32.mxu0 0.0
    %173 = vmatmul.mubr.f32.gmra.mrb[0].mxu0 %v97
    %v174 = vpop.f32.mrb[0].mxu0
    %v175 = vadd.f32 %v93, %v174
    %v176 = vpop.f32.mrb[0].mxu0
    %177 = vmatprep.mubr.f32.mxu0 0.0
    %178 = vmatmul.mubr.f32.gmra.mrb[0].mxu0 %v100
    %v179 = vpop.f32.mrb[0].mxu0
    %v180 = vadd.f32 %v93, %v179
    %v181 = vpop.f32.mrb[0].mxu0
    %182 = vmatprep.mubr.f32.mxu0 0.0
    %183 = vmatmul.mubr.f32.gmra.mrb[0].mxu0 %v103
    %v184 = vpop.f32.mrb[0].mxu0
    %v185 = vadd.f32 %v93, %v184
    %v186 = vpop.f32.mrb[0].mxu0
    %187 = vmatprep.mubr.f32.mxu0 0.0
    %188 = vmatmul.mubr.f32.gmra.mrb[0].mxu0 %v106
    %v189 = vpop.f32.mrb[0].mxu0
    %v190 = vadd.f32 %v93, %v189
    %v191 = vpop.f32.mrb[0].mxu0
    %192 = vdwg.mxu0
    %v193 = vld [vmem:[#allocation4] sm:$0xff]
    %v194 = vld [vmem:[#allocation4 + $0x8] sm:$0xff]
    %v195 = vld [vmem:[#allocation4 + $0x10] sm:$0xff]
    %v196 = vld [vmem:[#allocation4 + $0x18] sm:$0xff]
    %v197 = vld [vmem:[#allocation7] sm:$0xff]
    %v198 = vld [vmem:[#allocation7 + $0x8] sm:$0xff]
    %v199 = vld [vmem:[#allocation7 + $0x10] sm:$0xff]
    %v200 = vld [vmem:[#allocation7 + $0x18] sm:$0xff]
    %v201 = vld [vmem:[%s5] sm:$0x1]
    %v203 = vlaneseq
    %v204 = vshrl.u32 %v203, 7
    %v205 = vsub.s32 0, %v204
    %v206 = vrot.slane %v201, %v205
    %v209 = vsel %vm95, %v193, 0
    %v212 = vsel %vm95, %v194, 0
    %v215 = vsel %vm95, %v195, 0
    %v218 = vsel %vm95, %v196, 0
    %220 = vmatprep.subr.mxu0 0.0
    %221 = vmatpush1.msra.mxu0 %v197
    %222 = vmatprep.subr.mxu0 0.0
    %223 = vmatpush1.msra.mxu0 %v198
    %224 = vmatprep.subr.mxu0 0.0
    %225 = vmatpush1.msra.mxu0 %v199
    %226 = vmatprep.subr.mxu0 0.0
    %227 = vmatpush1.msra.mxu0 %v200
    %228 = vmatprep.subr.mxu0 0.0
    %229 = vmatpush1.msra.mxu0 0.0
    %230 = vmatprep.subr.mxu0 0.0
    %231 = vmatpush1.msra.mxu0 0.0
    %232 = vmatprep.subr.mxu0 0.0
    %233 = vmatpush1.msra.mxu0 0.0
    %234 = vmatprep.subr.mxu0 0.0
    %235 = vmatpush1.msra.mxu0 0.0
    %236 = vmatprep.subr.mxu0 0.0
    %237 = vmatpush1.msra.mxu0 0.0
    %238 = vmatprep.subr.mxu0 0.0
    %239 = vmatpush1.msra.mxu0 0.0
    %240 = vmatprep.subr.mxu0 0.0
    %241 = vmatpush1.msra.mxu0 0.0
    %242 = vmatprep.subr.mxu0 0.0
    %243 = vmatpush1.msra.mxu0 0.0
    %244 = vmatprep.subr.mxu0 0.0
    %245 = vmatpush1.msra.mxu0 0.0
    %246 = vmatprep.subr.mxu0 0.0
    %247 = vmatpush1.msra.mxu0 0.0
    %248 = vmatprep.subr.mxu0 0.0
    %249 = vmatpush1.msra.mxu0 0.0
    %250 = vmatprep.subr.mxu0 0.0
    %251 = vmatpush1.msra.mxu0 0.0
    %252 = vmatprep.subr.mxu0 0.0
    %253 = vmatpush1.msra.mxu0 0.0
    %254 = vmatprep.subr.mxu0 0.0
    %255 = vmatpush1.msra.mxu0 0.0
    %256 = vmatprep.subr.mxu0 0.0
    %257 = vmatpush1.msra.mxu0 0.0
    %258 = vmatprep.subr.mxu0 0.0
    %259 = vmatpush1.msra.mxu0 0.0
    %260 = vmatprep.subr.mxu0 0.0
    %261 = vmatpush1.msra.mxu0 0.0
    %262 = vmatprep.subr.mxu0 0.0
    %263 = vmatpush1.msra.mxu0 0.0
    %264 = vmatprep.subr.mxu0 0.0
    %265 = vmatpush1.msra.mxu0 0.0
    %266 = vmatprep.subr.mxu0 0.0
    %267 = vmatpush1.msra.mxu0 0.0
    %268 = vmatprep.subr.mxu0 0.0
    %269 = vmatpush1.msra.mxu0 0.0
    %270 = vmatprep.subr.mxu0 0.0
    %271 = vmatpush1.msra.mxu0 0.0
    %272 = vmatprep.subr.mxu0 0.0
    %273 = vmatpush1.msra.mxu0 0.0
    %274 = vmatprep.subr.mxu0 0.0
    %275 = vmatpush1.msra.mxu0 0.0
    %276 = vmatprep.subr.mxu0 0.0
    %277 = vmatpush1.msra.mxu0 0.0
    %278 = vmatprep.subr.mxu0 0.0
    %279 = vmatpush1.msra.mxu0 0.0
    %280 = vmatprep.subr.mxu0 0.0
    %281 = vmatpush1.msra.mxu0 0.0
    %282 = vmatprep.subr.mxu0 0.0
    %283 = vmatpush1.msra.mxu0 0.0
    %284 = vmatprep.mubr.f32.mxu0 0.0
    %285 = vmatmul.mubr.f32.gmra.mrb[0].mxu0 %v209
    %v286 = vpop.f32.mrb[0].mxu0
    %v287 = vadd.f32 %v206, %v286
    %v288 = vpop.f32.mrb[0].mxu0
    %289 = vmatprep.mubr.f32.mxu0 0.0
    %290 = vmatmul.mubr.f32.gmra.mrb[0].mxu0 %v212
    %v291 = vpop.f32.mrb[0].mxu0
    %v292 = vadd.f32 %v206, %v291
    %v293 = vpop.f32.mrb[0].mxu0
    %294 = vmatprep.mubr.f32.mxu0 0.0
    %295 = vmatmul.mubr.f32.gmra.mrb[0].mxu0 %v215
    %v296 = vpop.f32.mrb[0].mxu0
    %v297 = vadd.f32 %v206, %v296
    %v298 = vpop.f32.mrb[0].mxu0
    %299 = vmatprep.mubr.f32.mxu0 0.0
    %300 = vmatmul.mubr.f32.gmra.mrb[0].mxu0 %v218
    %v301 = vpop.f32.mrb[0].mxu0
    %v302 = vadd.f32 %v206, %v301
    %v303 = vpop.f32.mrb[0].mxu0
    %304 = vdwg.mxu0
    %309 = vrot.lane.b32.xlu0 %v175, 120
    %v310 = vpop.permute.xlu0 %309
    %311 = vrot.lane.b32.xlu0 %v180, 120
    %v312 = vpop.permute.xlu0 %311
    %313 = vrot.lane.b32.xlu0 %v185, 120
    %v314 = vpop.permute.xlu0 %313
    %315 = vrot.lane.b32.xlu0 %v190, 120
    %v316 = vpop.permute.xlu0 %315
    %321 = vrot.lane.b32.xlu0 %v175, 112
    %v322 = vpop.permute.xlu0 %321
    %323 = vrot.lane.b32.xlu0 %v180, 112
    %v324 = vpop.permute.xlu0 %323
    %325 = vrot.lane.b32.xlu0 %v185, 112
    %v326 = vpop.permute.xlu0 %325
    %327 = vrot.lane.b32.xlu0 %v190, 112
    %v328 = vpop.permute.xlu0 %327
    %333 = vrot.lane.b32.xlu0 %v175, 104
    %v334 = vpop.permute.xlu0 %333
    %335 = vrot.lane.b32.xlu0 %v180, 104
    %v336 = vpop.permute.xlu0 %335
    %337 = vrot.lane.b32.xlu0 %v185, 104
    %v338 = vpop.permute.xlu0 %337
    %339 = vrot.lane.b32.xlu0 %v190, 104
    %v340 = vpop.permute.xlu0 %339
    %v345 = vcombine.low %v175, %v322
    %v346 = vcombine.high %v175, %v322
    %v348 = vunpack.c.l.s4 1983009808
    %v349 = vunpack.c.0.s8 %v348
    %v350 = vlaneseq
    %v351 = vshrl.u32 %v350, 7
    %v352 = vsub.s32 %v349, %v351
    %v353 = vrot.slane %v345, %v352
    %v355 = vunpack.c.l.s4 1983009808
    %v356 = vunpack.c.0.s8 %v355
    %v357 = vlaneseq
    %v358 = vshrl.u32 %v357, 7
    %v359 = vsub.s32 %v356, %v358
    %v360 = vrot.slane %v346, %v359
    %v361 = vcombine.low %v310, %v334
    %v362 = vcombine.high %v310, %v334
    %v364 = vunpack.c.l.s4 1983009808
    %v365 = vunpack.c.0.s8 %v364
    %v366 = vlaneseq
    %v367 = vshrl.u32 %v366, 7
    %v368 = vsub.s32 %v365, %v367
    %v369 = vrot.slane %v361, %v368
    %v371 = vunpack.c.l.s4 1983009808
    %v372 = vunpack.c.0.s8 %v371
    %v373 = vlaneseq
    %v374 = vshrl.u32 %v373, 7
    %v375 = vsub.s32 %v372, %v374
    %v376 = vrot.slane %v362, %v375
    %v377 = vcombine.low %v353, %v369
    %v378 = vcombine.high %v353, %v369
    %v380 = vunpack.c.l.s4 1934713408
    %v381 = vunpack.c.0.s8 %v380
    %v382 = vlaneseq
    %v383 = vshrl.u32 %v382, 7
    %v384 = vsub.s32 %v381, %v383
    %v385 = vrot.slane %v377, %v384
    %v387 = vunpack.c.l.s4 1934713408
    %v388 = vunpack.c.0.s8 %v387
    %v389 = vlaneseq
    %v390 = vshrl.u32 %v389, 7
    %v391 = vsub.s32 %v388, %v390
    %v392 = vrot.slane %v378, %v391
    %v393 = vcombine.low %v360, %v376
    %v394 = vcombine.high %v360, %v376
    %v396 = vunpack.c.l.s4 1934713408
    %v397 = vunpack.c.0.s8 %v396
    %v398 = vlaneseq
    %v399 = vshrl.u32 %v398, 7
    %v400 = vsub.s32 %v397, %v399
    %v401 = vrot.slane %v393, %v400
    %v403 = vunpack.c.l.s4 1934713408
    %v404 = vunpack.c.0.s8 %v403
    %v405 = vlaneseq
    %v406 = vshrl.u32 %v405, 7
    %v407 = vsub.s32 %v404, %v406
    %v408 = vrot.slane %v394, %v407
    %v409 = vcombine.high %v385, 0.0
    %v410 = vcombine.high %v392, 0.0
    %v411 = vcombine.high %v401, 0.0
    %v412 = vcombine.high %v408, 0.0
    %v413 = vcombine.low %v180, %v324
    %v414 = vcombine.high %v180, %v324
    %v416 = vunpack.c.l.s4 1983009808
    %v417 = vunpack.c.0.s8 %v416
    %v418 = vlaneseq
    %v419 = vshrl.u32 %v418, 7
    %v420 = vsub.s32 %v417, %v419
    %v421 = vrot.slane %v413, %v420
    %v423 = vunpack.c.l.s4 1983009808
    %v424 = vunpack.c.0.s8 %v423
    %v425 = vlaneseq
    %v426 = vshrl.u32 %v425, 7
    %v427 = vsub.s32 %v424, %v426
    %v428 = vrot.slane %v414, %v427
    %v429 = vcombine.low %v312, %v336
    %v430 = vcombine.high %v312, %v336
    %v432 = vunpack.c.l.s4 1983009808
    %v433 = vunpack.c.0.s8 %v432
    %v434 = vlaneseq
    %v435 = vshrl.u32 %v434, 7
    %v436 = vsub.s32 %v433, %v435
    %v437 = vrot.slane %v429, %v436
    %v439 = vunpack.c.l.s4 1983009808
    %v440 = vunpack.c.0.s8 %v439
    %v441 = vlaneseq
    %v442 = vshrl.u32 %v441, 7
    %v443 = vsub.s32 %v440, %v442
    %v444 = vrot.slane %v430, %v443
    %v445 = vcombine.low %v421, %v437
    %v446 = vcombine.high %v421, %v437
    %v448 = vunpack.c.l.s4 1934713408
    %v449 = vunpack.c.0.s8 %v448
    %v450 = vlaneseq
    %v451 = vshrl.u32 %v450, 7
    %v452 = vsub.s32 %v449, %v451
    %v453 = vrot.slane %v445, %v452
    %v455 = vunpack.c.l.s4 1934713408
    %v456 = vunpack.c.0.s8 %v455
    %v457 = vlaneseq
    %v458 = vshrl.u32 %v457, 7
    %v459 = vsub.s32 %v456, %v458
    %v460 = vrot.slane %v446, %v459
    %v461 = vcombine.low %v428, %v444
    %v462 = vcombine.high %v428, %v444
    %v464 = vunpack.c.l.s4 1934713408
    %v465 = vunpack.c.0.s8 %v464
    %v466 = vlaneseq
    %v467 = vshrl.u32 %v466, 7
    %v468 = vsub.s32 %v465, %v467
    %v469 = vrot.slane %v461, %v468
    %v471 = vunpack.c.l.s4 1934713408
    %v472 = vunpack.c.0.s8 %v471
    %v473 = vlaneseq
    %v474 = vshrl.u32 %v473, 7
    %v475 = vsub.s32 %v472, %v474
    %v476 = vrot.slane %v462, %v475
    %v477 = vcombine.high %v453, 0.0
    %v478 = vcombine.high %v460, 0.0
    %v479 = vcombine.high %v469, 0.0
    %v480 = vcombine.high %v476, 0.0
    %v481 = vcombine.low %v185, %v326
    %v482 = vcombine.high %v185, %v326
    %v484 = vunpack.c.l.s4 1983009808
    %v485 = vunpack.c.0.s8 %v484
    %v486 = vlaneseq
    %v487 = vshrl.u32 %v486, 7
    %v488 = vsub.s32 %v485, %v487
    %v489 = vrot.slane %v481, %v488
    %v491 = vunpack.c.l.s4 1983009808
    %v492 = vunpack.c.0.s8 %v491
    %v493 = vlaneseq
    %v494 = vshrl.u32 %v493, 7
    %v495 = vsub.s32 %v492, %v494
    %v496 = vrot.slane %v482, %v495
    %v497 = vcombine.low %v314, %v338
    %v498 = vcombine.high %v314, %v338
    %v500 = vunpack.c.l.s4 1983009808
    %v501 = vunpack.c.0.s8 %v500
    %v502 = vlaneseq
    %v503 = vshrl.u32 %v502, 7
    %v504 = vsub.s32 %v501, %v503
    %v505 = vrot.slane %v497, %v504
    %v507 = vunpack.c.l.s4 1983009808
    %v508 = vunpack.c.0.s8 %v507
    %v509 = vlaneseq
    %v510 = vshrl.u32 %v509, 7
    %v511 = vsub.s32 %v508, %v510
    %v512 = vrot.slane %v498, %v511
    %v513 = vcombine.low %v489, %v505
    %v514 = vcombine.high %v489, %v505
    %v516 = vunpack.c.l.s4 1934713408
    %v517 = vunpack.c.0.s8 %v516
    %v518 = vlaneseq
    %v519 = vshrl.u32 %v518, 7
    %v520 = vsub.s32 %v517, %v519
    %v521 = vrot.slane %v513, %v520
    %v523 = vunpack.c.l.s4 1934713408
    %v524 = vunpack.c.0.s8 %v523
    %v525 = vlaneseq
    %v526 = vshrl.u32 %v525, 7
    %v527 = vsub.s32 %v524, %v526
    %v528 = vrot.slane %v514, %v527
    %v529 = vcombine.low %v496, %v512
    %v530 = vcombine.high %v496, %v512
    %v532 = vunpack.c.l.s4 1934713408
    %v533 = vunpack.c.0.s8 %v532
    %v534 = vlaneseq
    %v535 = vshrl.u32 %v534, 7
    %v536 = vsub.s32 %v533, %v535
    %v537 = vrot.slane %v529, %v536
    %v539 = vunpack.c.l.s4 1934713408
    %v540 = vunpack.c.0.s8 %v539
    %v541 = vlaneseq
    %v542 = vshrl.u32 %v541, 7
    %v543 = vsub.s32 %v540, %v542
    %v544 = vrot.slane %v530, %v543
    %v545 = vcombine.high %v521, 0.0
    %v546 = vcombine.high %v528, 0.0
    %v547 = vcombine.high %v537, 0.0
    %v548 = vcombine.high %v544, 0.0
    %v549 = vcombine.low %v190, %v328
    %v550 = vcombine.high %v190, %v328
    %v552 = vunpack.c.l.s4 1983009808
    %v553 = vunpack.c.0.s8 %v552
    %v554 = vlaneseq
    %v555 = vshrl.u32 %v554, 7
    %v556 = vsub.s32 %v553, %v555
    %v557 = vrot.slane %v549, %v556
    %v559 = vunpack.c.l.s4 1983009808
    %v560 = vunpack.c.0.s8 %v559
    %v561 = vlaneseq
    %v562 = vshrl.u32 %v561, 7
    %v563 = vsub.s32 %v560, %v562
    %v564 = vrot.slane %v550, %v563
    %v565 = vcombine.low %v316, %v340
    %v566 = vcombine.high %v316, %v340
    %v568 = vunpack.c.l.s4 1983009808
    %v569 = vunpack.c.0.s8 %v568
    %v570 = vlaneseq
    %v571 = vshrl.u32 %v570, 7
    %v572 = vsub.s32 %v569, %v571
    %v573 = vrot.slane %v565, %v572
    %v575 = vunpack.c.l.s4 1983009808
    %v576 = vunpack.c.0.s8 %v575
    %v577 = vlaneseq
    %v578 = vshrl.u32 %v577, 7
    %v579 = vsub.s32 %v576, %v578
    %v580 = vrot.slane %v566, %v579
    %v581 = vcombine.low %v557, %v573
    %v582 = vcombine.high %v557, %v573
    %v584 = vunpack.c.l.s4 1934713408
    %v585 = vunpack.c.0.s8 %v584
    %v586 = vlaneseq
    %v587 = vshrl.u32 %v586, 7
    %v588 = vsub.s32 %v585, %v587
    %v589 = vrot.slane %v581, %v588
    %v591 = vunpack.c.l.s4 1934713408
    %v592 = vunpack.c.0.s8 %v591
    %v593 = vlaneseq
    %v594 = vshrl.u32 %v593, 7
    %v595 = vsub.s32 %v592, %v594
    %v596 = vrot.slane %v582, %v595
    %v597 = vcombine.low %v564, %v580
    %v598 = vcombine.high %v564, %v580
    %v600 = vunpack.c.l.s4 1934713408
    %v601 = vunpack.c.0.s8 %v600
    %v602 = vlaneseq
    %v603 = vshrl.u32 %v602, 7
    %v604 = vsub.s32 %v601, %v603
    %v605 = vrot.slane %v597, %v604
    %v607 = vunpack.c.l.s4 1934713408
    %v608 = vunpack.c.0.s8 %v607
    %v609 = vlaneseq
    %v610 = vshrl.u32 %v609, 7
    %v611 = vsub.s32 %v608, %v610
    %v612 = vrot.slane %v598, %v611
    %v613 = vcombine.high %v589, 0.0
    %v614 = vcombine.high %v596, 0.0
    %v615 = vcombine.high %v605, 0.0
    %v616 = vcombine.high %v612, 0.0
    %v617 = vcombine.low %v385, %v392
    %v619 = vunpack.c.l.s4 1983009808
    %v620 = vunpack.c.0.s8 %v619
    %v621 = vlaneseq
    %v622 = vshrl.u32 %v621, 7
    %v623 = vsub.s32 %v620, %v622
    %v624 = vrot.slane %v617, %v623
    %v625 = vcombine.low %v409, %v410
    %v627 = vunpack.c.l.s4 1983009808
    %v628 = vunpack.c.0.s8 %v627
    %v629 = vlaneseq
    %v630 = vshrl.u32 %v629, 7
    %v631 = vsub.s32 %v628, %v630
    %v632 = vrot.slane %v625, %v631
    %v633 = vcombine.low %v401, %v408
    %v635 = vunpack.c.l.s4 1983009808
    %v636 = vunpack.c.0.s8 %v635
    %v637 = vlaneseq
    %v638 = vshrl.u32 %v637, 7
    %v639 = vsub.s32 %v636, %v638
    %v640 = vrot.slane %v633, %v639
    %v641 = vcombine.low %v411, %v412
    %v643 = vunpack.c.l.s4 1983009808
    %v644 = vunpack.c.0.s8 %v643
    %v645 = vlaneseq
    %v646 = vshrl.u32 %v645, 7
    %v647 = vsub.s32 %v644, %v646
    %v648 = vrot.slane %v641, %v647
    %v649 = vcombine.low %v624, %v632
    %v650 = vcombine.high %v624, %v632
    %v652 = vunpack.c.l.s4 1934713408
    %v653 = vunpack.c.0.s8 %v652
    %v654 = vlaneseq
    %v655 = vshrl.u32 %v654, 7
    %v656 = vsub.s32 %v653, %v655
    %v657 = vrot.slane %v649, %v656
    %v659 = vunpack.c.l.s4 1934713408
    %v660 = vunpack.c.0.s8 %v659
    %v661 = vlaneseq
    %v662 = vshrl.u32 %v661, 7
    %v663 = vsub.s32 %v660, %v662
    %v664 = vrot.slane %v650, %v663
    %v665 = vcombine.low %v640, %v648
    %v666 = vcombine.high %v640, %v648
    %v668 = vunpack.c.l.s4 1934713408
    %v669 = vunpack.c.0.s8 %v668
    %v670 = vlaneseq
    %v671 = vshrl.u32 %v670, 7
    %v672 = vsub.s32 %v669, %v671
    %v673 = vrot.slane %v665, %v672
    %v675 = vunpack.c.l.s4 1934713408
    %v676 = vunpack.c.0.s8 %v675
    %v677 = vlaneseq
    %v678 = vshrl.u32 %v677, 7
    %v679 = vsub.s32 %v676, %v678
    %v680 = vrot.slane %v666, %v679
    %v681 = vcombine.low %v657, %v673
    %v682 = vcombine.high %v657, %v673
    %v683 = vcombine.low %v664, %v680
    %v684 = vcombine.high %v664, %v680
    %v685 = vcombine.low %v453, %v460
    %v687 = vunpack.c.l.s4 1983009808
    %v688 = vunpack.c.0.s8 %v687
    %v689 = vlaneseq
    %v690 = vshrl.u32 %v689, 7
    %v691 = vsub.s32 %v688, %v690
    %v692 = vrot.slane %v685, %v691
    %v693 = vcombine.low %v477, %v478
    %v695 = vunpack.c.l.s4 1983009808
    %v696 = vunpack.c.0.s8 %v695
    %v697 = vlaneseq
    %v698 = vshrl.u32 %v697, 7
    %v699 = vsub.s32 %v696, %v698
    %v700 = vrot.slane %v693, %v699
    %v701 = vcombine.low %v469, %v476
    %v703 = vunpack.c.l.s4 1983009808
    %v704 = vunpack.c.0.s8 %v703
    %v705 = vlaneseq
    %v706 = vshrl.u32 %v705, 7
    %v707 = vsub.s32 %v704, %v706
    %v708 = vrot.slane %v701, %v707
    %v709 = vcombine.low %v479, %v480
    %v711 = vunpack.c.l.s4 1983009808
    %v712 = vunpack.c.0.s8 %v711
    %v713 = vlaneseq
    %v714 = vshrl.u32 %v713, 7
    %v715 = vsub.s32 %v712, %v714
    %v716 = vrot.slane %v709, %v715
    %v717 = vcombine.low %v692, %v700
    %v718 = vcombine.high %v692, %v700
    %v720 = vunpack.c.l.s4 1934713408
    %v721 = vunpack.c.0.s8 %v720
    %v722 = vlaneseq
    %v723 = vshrl.u32 %v722, 7
    %v724 = vsub.s32 %v721, %v723
    %v725 = vrot.slane %v717, %v724
    %v727 = vunpack.c.l.s4 1934713408
    %v728 = vunpack.c.0.s8 %v727
    %v729 = vlaneseq
    %v730 = vshrl.u32 %v729, 7
    %v731 = vsub.s32 %v728, %v730
    %v732 = vrot.slane %v718, %v731
    %v733 = vcombine.low %v708, %v716
    %v734 = vcombine.high %v708, %v716
    %v736 = vunpack.c.l.s4 1934713408
    %v737 = vunpack.c.0.s8 %v736
    %v738 = vlaneseq
    %v739 = vshrl.u32 %v738, 7
    %v740 = vsub.s32 %v737, %v739
    %v741 = vrot.slane %v733, %v740
    %v743 = vunpack.c.l.s4 1934713408
    %v744 = vunpack.c.0.s8 %v743
    %v745 = vlaneseq
    %v746 = vshrl.u32 %v745, 7
    %v747 = vsub.s32 %v744, %v746
    %v748 = vrot.slane %v734, %v747
    %v749 = vcombine.low %v725, %v741
    %v750 = vcombine.high %v725, %v741
    %v751 = vcombine.low %v732, %v748
    %v752 = vcombine.high %v732, %v748
    %v753 = vcombine.low %v521, %v528
    %v755 = vunpack.c.l.s4 1983009808
    %v756 = vunpack.c.0.s8 %v755
    %v757 = vlaneseq
    %v758 = vshrl.u32 %v757, 7
    %v759 = vsub.s32 %v756, %v758
    %v760 = vrot.slane %v753, %v759
    %v761 = vcombine.low %v545, %v546
    %v763 = vunpack.c.l.s4 1983009808
    %v764 = vunpack.c.0.s8 %v763
    %v765 = vlaneseq
    %v766 = vshrl.u32 %v765, 7
    %v767 = vsub.s32 %v764, %v766
    %v768 = vrot.slane %v761, %v767
    %v769 = vcombine.low %v537, %v544
    %v771 = vunpack.c.l.s4 1983009808
    %v772 = vunpack.c.0.s8 %v771
    %v773 = vlaneseq
    %v774 = vshrl.u32 %v773, 7
    %v775 = vsub.s32 %v772, %v774
    %v776 = vrot.slane %v769, %v775
    %v777 = vcombine.low %v547, %v548
    %v779 = vunpack.c.l.s4 1983009808
    %v780 = vunpack.c.0.s8 %v779
    %v781 = vlaneseq
    %v782 = vshrl.u32 %v781, 7
    %v783 = vsub.s32 %v780, %v782
    %v784 = vrot.slane %v777, %v783
    %v785 = vcombine.low %v760, %v768
    %v786 = vcombine.high %v760, %v768
    %v788 = vunpack.c.l.s4 1934713408
    %v789 = vunpack.c.0.s8 %v788
    %v790 = vlaneseq
    %v791 = vshrl.u32 %v790, 7
    %v792 = vsub.s32 %v789, %v791
    %v793 = vrot.slane %v785, %v792
    %v795 = vunpack.c.l.s4 1934713408
    %v796 = vunpack.c.0.s8 %v795
    %v797 = vlaneseq
    %v798 = vshrl.u32 %v797, 7
    %v799 = vsub.s32 %v796, %v798
    %v800 = vrot.slane %v786, %v799
    %v801 = vcombine.low %v776, %v784
    %v802 = vcombine.high %v776, %v784
    %v804 = vunpack.c.l.s4 1934713408
    %v805 = vunpack.c.0.s8 %v804
    %v806 = vlaneseq
    %v807 = vshrl.u32 %v806, 7
    %v808 = vsub.s32 %v805, %v807
    %v809 = vrot.slane %v801, %v808
    %v811 = vunpack.c.l.s4 1934713408
    %v812 = vunpack.c.0.s8 %v811
    %v813 = vlaneseq
    %v814 = vshrl.u32 %v813, 7
    %v815 = vsub.s32 %v812, %v814
    %v816 = vrot.slane %v802, %v815
    %v817 = vcombine.low %v793, %v809
    %v818 = vcombine.high %v793, %v809
    %v819 = vcombine.low %v800, %v816
    %v820 = vcombine.high %v800, %v816
    %v821 = vcombine.low %v589, %v596
    %v823 = vunpack.c.l.s4 1983009808
    %v824 = vunpack.c.0.s8 %v823
    %v825 = vlaneseq
    %v826 = vshrl.u32 %v825, 7
    %v827 = vsub.s32 %v824, %v826
    %v828 = vrot.slane %v821, %v827
    %v829 = vcombine.low %v613, %v614
    %v831 = vunpack.c.l.s4 1983009808
    %v832 = vunpack.c.0.s8 %v831
    %v833 = vlaneseq
    %v834 = vshrl.u32 %v833, 7
    %v835 = vsub.s32 %v832, %v834
    %v836 = vrot.slane %v829, %v835
    %v837 = vcombine.low %v605, %v612
    %v839 = vunpack.c.l.s4 1983009808
    %v840 = vunpack.c.0.s8 %v839
    %v841 = vlaneseq
    %v842 = vshrl.u32 %v841, 7
    %v843 = vsub.s32 %v840, %v842
    %v844 = vrot.slane %v837, %v843
    %v845 = vcombine.low %v615, %v616
    %v847 = vunpack.c.l.s4 1983009808
    %v848 = vunpack.c.0.s8 %v847
    %v849 = vlaneseq
    %v850 = vshrl.u32 %v849, 7
    %v851 = vsub.s32 %v848, %v850
    %v852 = vrot.slane %v845, %v851
    %v853 = vcombine.low %v828, %v836
    %v854 = vcombine.high %v828, %v836
    %v856 = vunpack.c.l.s4 1934713408
    %v857 = vunpack.c.0.s8 %v856
    %v858 = vlaneseq
    %v859 = vshrl.u32 %v858, 7
    %v860 = vsub.s32 %v857, %v859
    %v861 = vrot.slane %v853, %v860
    %v863 = vunpack.c.l.s4 1934713408
    %v864 = vunpack.c.0.s8 %v863
    %v865 = vlaneseq
    %v866 = vshrl.u32 %v865, 7
    %v867 = vsub.s32 %v864, %v866
    %v868 = vrot.slane %v854, %v867
    %v869 = vcombine.low %v844, %v852
    %v870 = vcombine.high %v844, %v852
    %v872 = vunpack.c.l.s4 1934713408
    %v873 = vunpack.c.0.s8 %v872
    %v874 = vlaneseq
    %v875 = vshrl.u32 %v874, 7
    %v876 = vsub.s32 %v873, %v875
    %v877 = vrot.slane %v869, %v876
    %v879 = vunpack.c.l.s4 1934713408
    %v880 = vunpack.c.0.s8 %v879
    %v881 = vlaneseq
    %v882 = vshrl.u32 %v881, 7
    %v883 = vsub.s32 %v880, %v882
    %v884 = vrot.slane %v870, %v883
    %v885 = vcombine.low %v861, %v877
    %v886 = vcombine.high %v861, %v877
    %v887 = vcombine.low %v868, %v884
    %v888 = vcombine.high %v868, %v884
    %vm889 = vcmask 64512
    %890 = vst.msk [vmem:[%s6] sm:$0xff] %vm889, %v681
    %891 = vst.msk [vmem:[%s6 + $0x8] sm:$0xff] %vm889, %v749
    %892 = vst.msk [vmem:[%s6 + $0x10] sm:$0xff] %vm889, %v817
    %893 = vst.msk [vmem:[%s6 + $0x18] sm:$0xff] %vm889, %v885
    %894 = vst.msk [vmem:[%s6 + $0x20] sm:$0xff] %vm889, %v682
    %895 = vst.msk [vmem:[%s6 + $0x28] sm:$0xff] %vm889, %v750
    %896 = vst.msk [vmem:[%s6 + $0x30] sm:$0xff] %vm889, %v818
    %897 = vst.msk [vmem:[%s6 + $0x38] sm:$0xff] %vm889, %v886
    %898 = vst.msk [vmem:[%s6 + $0x40] sm:$0xff] %vm889, %v683
    %899 = vst.msk [vmem:[%s6 + $0x48] sm:$0xff] %vm889, %v751
    %900 = vst.msk [vmem:[%s6 + $0x50] sm:$0xff] %vm889, %v819
    %901 = vst.msk [vmem:[%s6 + $0x58] sm:$0xff] %vm889, %v887
    %902 = vst.msk [vmem:[%s6 + $0x60] sm:$0xff] %vm889, %v684
    %903 = vst.msk [vmem:[%s6 + $0x68] sm:$0xff] %vm889, %v752
    %904 = vst.msk [vmem:[%s6 + $0x70] sm:$0xff] %vm889, %v820
    %905 = vst.msk [vmem:[%s6 + $0x78] sm:$0xff] %vm889, %v888
    %910 = vrot.lane.b32.xlu0 %v287, 120
    %v911 = vpop.permute.xlu0 %910
    %912 = vrot.lane.b32.xlu0 %v292, 120
    %v913 = vpop.permute.xlu0 %912
    %914 = vrot.lane.b32.xlu0 %v297, 120
    %v915 = vpop.permute.xlu0 %914
    %916 = vrot.lane.b32.xlu0 %v302, 120
    %v917 = vpop.permute.xlu0 %916
    %922 = vrot.lane.b32.xlu0 %v287, 112
    %v923 = vpop.permute.xlu0 %922
    %924 = vrot.lane.b32.xlu0 %v292, 112
    %v925 = vpop.permute.xlu0 %924
    %926 = vrot.lane.b32.xlu0 %v297, 112
    %v927 = vpop.permute.xlu0 %926
    %928 = vrot.lane.b32.xlu0 %v302, 112
    %v929 = vpop.permute.xlu0 %928
    %934 = vrot.lane.b32.xlu0 %v287, 104
    %v935 = vpop.permute.xlu0 %934
    %936 = vrot.lane.b32.xlu0 %v292, 104
    %v937 = vpop.permute.xlu0 %936
    %938 = vrot.lane.b32.xlu0 %v297, 104
    %v939 = vpop.permute.xlu0 %938
    %940 = vrot.lane.b32.xlu0 %v302, 104
    %v941 = vpop.permute.xlu0 %940
    %v946 = vcombine.low %v287, %v923
    %v947 = vcombine.high %v287, %v923
    %v949 = vunpack.c.l.s4 1983009808
    %v950 = vunpack.c.0.s8 %v949
    %v951 = vlaneseq
    %v952 = vshrl.u32 %v951, 7
    %v953 = vsub.s32 %v950, %v952
    %v954 = vrot.slane %v946, %v953
    %v956 = vunpack.c.l.s4 1983009808
    %v957 = vunpack.c.0.s8 %v956
    %v958 = vlaneseq
    %v959 = vshrl.u32 %v958, 7
    %v960 = vsub.s32 %v957, %v959
    %v961 = vrot.slane %v947, %v960
    %v962 = vcombine.low %v911, %v935
    %v963 = vcombine.high %v911, %v935
    %v965 = vunpack.c.l.s4 1983009808
    %v966 = vunpack.c.0.s8 %v965
    %v967 = vlaneseq
    %v968 = vshrl.u32 %v967, 7
    %v969 = vsub.s32 %v966, %v968
    %v970 = vrot.slane %v962, %v969
    %v972 = vunpack.c.l.s4 1983009808
    %v973 = vunpack.c.0.s8 %v972
    %v974 = vlaneseq
    %v975 = vshrl.u32 %v974, 7
    %v976 = vsub.s32 %v973, %v975
    %v977 = vrot.slane %v963, %v976
    %v978 = vcombine.low %v954, %v970
    %v979 = vcombine.high %v954, %v970
    %v981 = vunpack.c.l.s4 1934713408
    %v982 = vunpack.c.0.s8 %v981
    %v983 = vlaneseq
    %v984 = vshrl.u32 %v983, 7
    %v985 = vsub.s32 %v982, %v984
    %v986 = vrot.slane %v978, %v985
    %v988 = vunpack.c.l.s4 1934713408
    %v989 = vunpack.c.0.s8 %v988
    %v990 = vlaneseq
    %v991 = vshrl.u32 %v990, 7
    %v992 = vsub.s32 %v989, %v991
    %v993 = vrot.slane %v979, %v992
    %v994 = vcombine.low %v961, %v977
    %v995 = vcombine.high %v961, %v977
    %v997 = vunpack.c.l.s4 1934713408
    %v998 = vunpack.c.0.s8 %v997
    %v999 = vlaneseq
    %v1000 = vshrl.u32 %v999, 7
    %v1001 = vsub.s32 %v998, %v1000
    %v1002 = vrot.slane %v994, %v1001
    %v1004 = vunpack.c.l.s4 1934713408
    %v1005 = vunpack.c.0.s8 %v1004
    %v1006 = vlaneseq
    %v1007 = vshrl.u32 %v1006, 7
    %v1008 = vsub.s32 %v1005, %v1007
    %v1009 = vrot.slane %v995, %v1008
    %v1010 = vcombine.high %v986, 0.0
    %v1011 = vcombine.high %v993, 0.0
    %v1012 = vcombine.high %v1002, 0.0
    %v1013 = vcombine.high %v1009, 0.0
    %v1014 = vcombine.low %v292, %v925
    %v1015 = vcombine.high %v292, %v925
    %v1017 = vunpack.c.l.s4 1983009808
    %v1018 = vunpack.c.0.s8 %v1017
    %v1019 = vlaneseq
    %v1020 = vshrl.u32 %v1019, 7
    %v1021 = vsub.s32 %v1018, %v1020
    %v1022 = vrot.slane %v1014, %v1021
    %v1024 = vunpack.c.l.s4 1983009808
    %v1025 = vunpack.c.0.s8 %v1024
    %v1026 = vlaneseq
    %v1027 = vshrl.u32 %v1026, 7
    %v1028 = vsub.s32 %v1025, %v1027
    %v1029 = vrot.slane %v1015, %v1028
    %v1030 = vcombine.low %v913, %v937
    %v1031 = vcombine.high %v913, %v937
    %v1033 = vunpack.c.l.s4 1983009808
    %v1034 = vunpack.c.0.s8 %v1033
    %v1035 = vlaneseq
    %v1036 = vshrl.u32 %v1035, 7
    %v1037 = vsub.s32 %v1034, %v1036
    %v1038 = vrot.slane %v1030, %v1037
    %v1040 = vunpack.c.l.s4 1983009808
    %v1041 = vunpack.c.0.s8 %v1040
    %v1042 = vlaneseq
    %v1043 = vshrl.u32 %v1042, 7
    %v1044 = vsub.s32 %v1041, %v1043
    %v1045 = vrot.slane %v1031, %v1044
    %v1046 = vcombine.low %v1022, %v1038
    %v1047 = vcombine.high %v1022, %v1038
    %v1049 = vunpack.c.l.s4 1934713408
    %v1050 = vunpack.c.0.s8 %v1049
    %v1051 = vlaneseq
    %v1052 = vshrl.u32 %v1051, 7
    %v1053 = vsub.s32 %v1050, %v1052
    %v1054 = vrot.slane %v1046, %v1053
    %v1056 = vunpack.c.l.s4 1934713408
    %v1057 = vunpack.c.0.s8 %v1056
    %v1058 = vlaneseq
    %v1059 = vshrl.u32 %v1058, 7
    %v1060 = vsub.s32 %v1057, %v1059
    %v1061 = vrot.slane %v1047, %v1060
    %v1062 = vcombine.low %v1029, %v1045
    %v1063 = vcombine.high %v1029, %v1045
    %v1065 = vunpack.c.l.s4 1934713408
    %v1066 = vunpack.c.0.s8 %v1065
    %v1067 = vlaneseq
    %v1068 = vshrl.u32 %v1067, 7
    %v1069 = vsub.s32 %v1066, %v1068
    %v1070 = vrot.slane %v1062, %v1069
    %v1072 = vunpack.c.l.s4 1934713408
    %v1073 = vunpack.c.0.s8 %v1072
    %v1074 = vlaneseq
    %v1075 = vshrl.u32 %v1074, 7
    %v1076 = vsub.s32 %v1073, %v1075
    %v1077 = vrot.slane %v1063, %v1076
    %v1078 = vcombine.high %v1054, 0.0
    %v1079 = vcombine.high %v1061, 0.0
    %v1080 = vcombine.high %v1070, 0.0
    %v1081 = vcombine.high %v1077, 0.0
    %v1082 = vcombine.low %v297, %v927
    %v1083 = vcombine.high %v297, %v927
    %v1085 = vunpack.c.l.s4 1983009808
    %v1086 = vunpack.c.0.s8 %v1085
    %v1087 = vlaneseq
    %v1088 = vshrl.u32 %v1087, 7
    %v1089 = vsub.s32 %v1086, %v1088
    %v1090 = vrot.slane %v1082, %v1089
    %v1092 = vunpack.c.l.s4 1983009808
    %v1093 = vunpack.c.0.s8 %v1092
    %v1094 = vlaneseq
    %v1095 = vshrl.u32 %v1094, 7
    %v1096 = vsub.s32 %v1093, %v1095
    %v1097 = vrot.slane %v1083, %v1096
    %v1098 = vcombine.low %v915, %v939
    %v1099 = vcombine.high %v915, %v939
    %v1101 = vunpack.c.l.s4 1983009808
    %v1102 = vunpack.c.0.s8 %v1101
    %v1103 = vlaneseq
    %v1104 = vshrl.u32 %v1103, 7
    %v1105 = vsub.s32 %v1102, %v1104
    %v1106 = vrot.slane %v1098, %v1105
    %v1108 = vunpack.c.l.s4 1983009808
    %v1109 = vunpack.c.0.s8 %v1108
    %v1110 = vlaneseq
    %v1111 = vshrl.u32 %v1110, 7
    %v1112 = vsub.s32 %v1109, %v1111
    %v1113 = vrot.slane %v1099, %v1112
    %v1114 = vcombine.low %v1090, %v1106
    %v1115 = vcombine.high %v1090, %v1106
    %v1117 = vunpack.c.l.s4 1934713408
    %v1118 = vunpack.c.0.s8 %v1117
    %v1119 = vlaneseq
    %v1120 = vshrl.u32 %v1119, 7
    %v1121 = vsub.s32 %v1118, %v1120
    %v1122 = vrot.slane %v1114, %v1121
    %v1124 = vunpack.c.l.s4 1934713408
    %v1125 = vunpack.c.0.s8 %v1124
    %v1126 = vlaneseq
    %v1127 = vshrl.u32 %v1126, 7
    %v1128 = vsub.s32 %v1125, %v1127
    %v1129 = vrot.slane %v1115, %v1128
    %v1130 = vcombine.low %v1097, %v1113
    %v1131 = vcombine.high %v1097, %v1113
    %v1133 = vunpack.c.l.s4 1934713408
    %v1134 = vunpack.c.0.s8 %v1133
    %v1135 = vlaneseq
    %v1136 = vshrl.u32 %v1135, 7
    %v1137 = vsub.s32 %v1134, %v1136
    %v1138 = vrot.slane %v1130, %v1137
    %v1140 = vunpack.c.l.s4 1934713408
    %v1141 = vunpack.c.0.s8 %v1140
    %v1142 = vlaneseq
    %v1143 = vshrl.u32 %v1142, 7
    %v1144 = vsub.s32 %v1141, %v1143
    %v1145 = vrot.slane %v1131, %v1144
    %v1146 = vcombine.high %v1122, 0.0
    %v1147 = vcombine.high %v1129, 0.0
    %v1148 = vcombine.high %v1138, 0.0
    %v1149 = vcombine.high %v1145, 0.0
    %v1150 = vcombine.low %v302, %v929
    %v1151 = vcombine.high %v302, %v929
    %v1153 = vunpack.c.l.s4 1983009808
    %v1154 = vunpack.c.0.s8 %v1153
    %v1155 = vlaneseq
    %v1156 = vshrl.u32 %v1155, 7
    %v1157 = vsub.s32 %v1154, %v1156
    %v1158 = vrot.slane %v1150, %v1157
    %v1160 = vunpack.c.l.s4 1983009808
    %v1161 = vunpack.c.0.s8 %v1160
    %v1162 = vlaneseq
    %v1163 = vshrl.u32 %v1162, 7
    %v1164 = vsub.s32 %v1161, %v1163
    %v1165 = vrot.slane %v1151, %v1164
    %v1166 = vcombine.low %v917, %v941
    %v1167 = vcombine.high %v917, %v941
    %v1169 = vunpack.c.l.s4 1983009808
    %v1170 = vunpack.c.0.s8 %v1169
    %v1171 = vlaneseq
    %v1172 = vshrl.u32 %v1171, 7
    %v1173 = vsub.s32 %v1170, %v1172
    %v1174 = vrot.slane %v1166, %v1173
    %v1176 = vunpack.c.l.s4 1983009808
    %v1177 = vunpack.c.0.s8 %v1176
    %v1178 = vlaneseq
    %v1179 = vshrl.u32 %v1178, 7
    %v1180 = vsub.s32 %v1177, %v1179
    %v1181 = vrot.slane %v1167, %v1180
    %v1182 = vcombine.low %v1158, %v1174
    %v1183 = vcombine.high %v1158, %v1174
    %v1185 = vunpack.c.l.s4 1934713408
    %v1186 = vunpack.c.0.s8 %v1185
    %v1187 = vlaneseq
    %v1188 = vshrl.u32 %v1187, 7
    %v1189 = vsub.s32 %v1186, %v1188
    %v1190 = vrot.slane %v1182, %v1189
    %v1192 = vunpack.c.l.s4 1934713408
    %v1193 = vunpack.c.0.s8 %v1192
    %v1194 = vlaneseq
    %v1195 = vshrl.u32 %v1194, 7
    %v1196 = vsub.s32 %v1193, %v1195
    %v1197 = vrot.slane %v1183, %v1196
    %v1198 = vcombine.low %v1165, %v1181
    %v1199 = vcombine.high %v1165, %v1181
    %v1201 = vunpack.c.l.s4 1934713408
    %v1202 = vunpack.c.0.s8 %v1201
    %v1203 = vlaneseq
    %v1204 = vshrl.u32 %v1203, 7
    %v1205 = vsub.s32 %v1202, %v1204
    %v1206 = vrot.slane %v1198, %v1205
    %v1208 = vunpack.c.l.s4 1934713408
    %v1209 = vunpack.c.0.s8 %v1208
    %v1210 = vlaneseq
    %v1211 = vshrl.u32 %v1210, 7
    %v1212 = vsub.s32 %v1209, %v1211
    %v1213 = vrot.slane %v1199, %v1212
    %v1214 = vcombine.high %v1190, 0.0
    %v1215 = vcombine.high %v1197, 0.0
    %v1216 = vcombine.high %v1206, 0.0
    %v1217 = vcombine.high %v1213, 0.0
    %v1218 = vcombine.low %v986, %v993
    %v1220 = vunpack.c.l.s4 1983009808
    %v1221 = vunpack.c.0.s8 %v1220
    %v1222 = vlaneseq
    %v1223 = vshrl.u32 %v1222, 7
    %v1224 = vsub.s32 %v1221, %v1223
    %v1225 = vrot.slane %v1218, %v1224
    %v1226 = vcombine.low %v1010, %v1011
    %v1228 = vunpack.c.l.s4 1983009808
    %v1229 = vunpack.c.0.s8 %v1228
    %v1230 = vlaneseq
    %v1231 = vshrl.u32 %v1230, 7
    %v1232 = vsub.s32 %v1229, %v1231
    %v1233 = vrot.slane %v1226, %v1232
    %v1234 = vcombine.low %v1002, %v1009
    %v1236 = vunpack.c.l.s4 1983009808
    %v1237 = vunpack.c.0.s8 %v1236
    %v1238 = vlaneseq
    %v1239 = vshrl.u32 %v1238, 7
    %v1240 = vsub.s32 %v1237, %v1239
    %v1241 = vrot.slane %v1234, %v1240
    %v1242 = vcombine.low %v1012, %v1013
    %v1244 = vunpack.c.l.s4 1983009808
    %v1245 = vunpack.c.0.s8 %v1244
    %v1246 = vlaneseq
    %v1247 = vshrl.u32 %v1246, 7
    %v1248 = vsub.s32 %v1245, %v1247
    %v1249 = vrot.slane %v1242, %v1248
    %v1250 = vcombine.low %v1225, %v1233
    %v1251 = vcombine.high %v1225, %v1233
    %v1253 = vunpack.c.l.s4 1934713408
    %v1254 = vunpack.c.0.s8 %v1253
    %v1255 = vlaneseq
    %v1256 = vshrl.u32 %v1255, 7
    %v1257 = vsub.s32 %v1254, %v1256
    %v1258 = vrot.slane %v1250, %v1257
    %v1260 = vunpack.c.l.s4 1934713408
    %v1261 = vunpack.c.0.s8 %v1260
    %v1262 = vlaneseq
    %v1263 = vshrl.u32 %v1262, 7
    %v1264 = vsub.s32 %v1261, %v1263
    %v1265 = vrot.slane %v1251, %v1264
    %v1266 = vcombine.low %v1241, %v1249
    %v1267 = vcombine.high %v1241, %v1249
    %v1269 = vunpack.c.l.s4 1934713408
    %v1270 = vunpack.c.0.s8 %v1269
    %v1271 = vlaneseq
    %v1272 = vshrl.u32 %v1271, 7
    %v1273 = vsub.s32 %v1270, %v1272
    %v1274 = vrot.slane %v1266, %v1273
    %v1276 = vunpack.c.l.s4 1934713408
    %v1277 = vunpack.c.0.s8 %v1276
    %v1278 = vlaneseq
    %v1279 = vshrl.u32 %v1278, 7
    %v1280 = vsub.s32 %v1277, %v1279
    %v1281 = vrot.slane %v1267, %v1280
    %v1282 = vcombine.low %v1258, %v1274
    %v1283 = vcombine.high %v1258, %v1274
    %v1284 = vcombine.low %v1265, %v1281
    %v1285 = vcombine.high %v1265, %v1281
    %v1286 = vcombine.low %v1054, %v1061
    %v1288 = vunpack.c.l.s4 1983009808
    %v1289 = vunpack.c.0.s8 %v1288
    %v1290 = vlaneseq
    %v1291 = vshrl.u32 %v1290, 7
    %v1292 = vsub.s32 %v1289, %v1291
    %v1293 = vrot.slane %v1286, %v1292
    %v1294 = vcombine.low %v1078, %v1079
    %v1296 = vunpack.c.l.s4 1983009808
    %v1297 = vunpack.c.0.s8 %v1296
    %v1298 = vlaneseq
    %v1299 = vshrl.u32 %v1298, 7
    %v1300 = vsub.s32 %v1297, %v1299
    %v1301 = vrot.slane %v1294, %v1300
    %v1302 = vcombine.low %v1070, %v1077
    %v1304 = vunpack.c.l.s4 1983009808
    %v1305 = vunpack.c.0.s8 %v1304
    %v1306 = vlaneseq
    %v1307 = vshrl.u32 %v1306, 7
    %v1308 = vsub.s32 %v1305, %v1307
    %v1309 = vrot.slane %v1302, %v1308
    %v1310 = vcombine.low %v1080, %v1081
    %v1312 = vunpack.c.l.s4 1983009808
    %v1313 = vunpack.c.0.s8 %v1312
    %v1314 = vlaneseq
    %v1315 = vshrl.u32 %v1314, 7
    %v1316 = vsub.s32 %v1313, %v1315
    %v1317 = vrot.slane %v1310, %v1316
    %v1318 = vcombine.low %v1293, %v1301
    %v1319 = vcombine.high %v1293, %v1301
    %v1321 = vunpack.c.l.s4 1934713408
    %v1322 = vunpack.c.0.s8 %v1321
    %v1323 = vlaneseq
    %v1324 = vshrl.u32 %v1323, 7
    %v1325 = vsub.s32 %v1322, %v1324
    %v1326 = vrot.slane %v1318, %v1325
    %v1328 = vunpack.c.l.s4 1934713408
    %v1329 = vunpack.c.0.s8 %v1328
    %v1330 = vlaneseq
    %v1331 = vshrl.u32 %v1330, 7
    %v1332 = vsub.s32 %v1329, %v1331
    %v1333 = vrot.slane %v1319, %v1332
    %v1334 = vcombine.low %v1309, %v1317
    %v1335 = vcombine.high %v1309, %v1317
    %v1337 = vunpack.c.l.s4 1934713408
    %v1338 = vunpack.c.0.s8 %v1337
    %v1339 = vlaneseq
    %v1340 = vshrl.u32 %v1339, 7
    %v1341 = vsub.s32 %v1338, %v1340
    %v1342 = vrot.slane %v1334, %v1341
    %v1344 = vunpack.c.l.s4 1934713408
    %v1345 = vunpack.c.0.s8 %v1344
    %v1346 = vlaneseq
    %v1347 = vshrl.u32 %v1346, 7
    %v1348 = vsub.s32 %v1345, %v1347
    %v1349 = vrot.slane %v1335, %v1348
    %v1350 = vcombine.low %v1326, %v1342
    %v1351 = vcombine.high %v1326, %v1342
    %v1352 = vcombine.low %v1333, %v1349
    %v1353 = vcombine.high %v1333, %v1349
    %v1354 = vcombine.low %v1122, %v1129
    %v1356 = vunpack.c.l.s4 1983009808
    %v1357 = vunpack.c.0.s8 %v1356
    %v1358 = vlaneseq
    %v1359 = vshrl.u32 %v1358, 7
    %v1360 = vsub.s32 %v1357, %v1359
    %v1361 = vrot.slane %v1354, %v1360
    %v1362 = vcombine.low %v1146, %v1147
    %v1364 = vunpack.c.l.s4 1983009808
    %v1365 = vunpack.c.0.s8 %v1364
    %v1366 = vlaneseq
    %v1367 = vshrl.u32 %v1366, 7
    %v1368 = vsub.s32 %v1365, %v1367
    %v1369 = vrot.slane %v1362, %v1368
    %v1370 = vcombine.low %v1138, %v1145
    %v1372 = vunpack.c.l.s4 1983009808
    %v1373 = vunpack.c.0.s8 %v1372
    %v1374 = vlaneseq
    %v1375 = vshrl.u32 %v1374, 7
    %v1376 = vsub.s32 %v1373, %v1375
    %v1377 = vrot.slane %v1370, %v1376
    %v1378 = vcombine.low %v1148, %v1149
    %v1380 = vunpack.c.l.s4 1983009808
    %v1381 = vunpack.c.0.s8 %v1380
    %v1382 = vlaneseq
    %v1383 = vshrl.u32 %v1382, 7
    %v1384 = vsub.s32 %v1381, %v1383
    %v1385 = vrot.slane %v1378, %v1384
    %v1386 = vcombine.low %v1361, %v1369
    %v1387 = vcombine.high %v1361, %v1369
    %v1389 = vunpack.c.l.s4 1934713408
    %v1390 = vunpack.c.0.s8 %v1389
    %v1391 = vlaneseq
    %v1392 = vshrl.u32 %v1391, 7
    %v1393 = vsub.s32 %v1390, %v1392
    %v1394 = vrot.slane %v1386, %v1393
    %v1396 = vunpack.c.l.s4 1934713408
    %v1397 = vunpack.c.0.s8 %v1396
    %v1398 = vlaneseq
    %v1399 = vshrl.u32 %v1398, 7
    %v1400 = vsub.s32 %v1397, %v1399
    %v1401 = vrot.slane %v1387, %v1400
    %v1402 = vcombine.low %v1377, %v1385
    %v1403 = vcombine.high %v1377, %v1385
    %v1405 = vunpack.c.l.s4 1934713408
    %v1406 = vunpack.c.0.s8 %v1405
    %v1407 = vlaneseq
    %v1408 = vshrl.u32 %v1407, 7
    %v1409 = vsub.s32 %v1406, %v1408
    %v1410 = vrot.slane %v1402, %v1409
    %v1412 = vunpack.c.l.s4 1934713408
    %v1413 = vunpack.c.0.s8 %v1412
    %v1414 = vlaneseq
    %v1415 = vshrl.u32 %v1414, 7
    %v1416 = vsub.s32 %v1413, %v1415
    %v1417 = vrot.slane %v1403, %v1416
    %v1418 = vcombine.low %v1394, %v1410
    %v1419 = vcombine.high %v1394, %v1410
    %v1420 = vcombine.low %v1401, %v1417
    %v1421 = vcombine.high %v1401, %v1417
    %v1422 = vcombine.low %v1190, %v1197
    %v1424 = vunpack.c.l.s4 1983009808
    %v1425 = vunpack.c.0.s8 %v1424
    %v1426 = vlaneseq
    %v1427 = vshrl.u32 %v1426, 7
    %v1428 = vsub.s32 %v1425, %v1427
    %v1429 = vrot.slane %v1422, %v1428
    %v1430 = vcombine.low %v1214, %v1215
    %v1432 = vunpack.c.l.s4 1983009808
    %v1433 = vunpack.c.0.s8 %v1432
    %v1434 = vlaneseq
    %v1435 = vshrl.u32 %v1434, 7
    %v1436 = vsub.s32 %v1433, %v1435
    %v1437 = vrot.slane %v1430, %v1436
    %v1438 = vcombine.low %v1206, %v1213
    %v1440 = vunpack.c.l.s4 1983009808
    %v1441 = vunpack.c.0.s8 %v1440
    %v1442 = vlaneseq
    %v1443 = vshrl.u32 %v1442, 7
    %v1444 = vsub.s32 %v1441, %v1443
    %v1445 = vrot.slane %v1438, %v1444
    %v1446 = vcombine.low %v1216, %v1217
    %v1448 = vunpack.c.l.s4 1983009808
    %v1449 = vunpack.c.0.s8 %v1448
    %v1450 = vlaneseq
    %v1451 = vshrl.u32 %v1450, 7
    %v1452 = vsub.s32 %v1449, %v1451
    %v1453 = vrot.slane %v1446, %v1452
    %v1454 = vcombine.low %v1429, %v1437
    %v1455 = vcombine.high %v1429, %v1437
    %v1457 = vunpack.c.l.s4 1934713408
    %v1458 = vunpack.c.0.s8 %v1457
    %v1459 = vlaneseq
    %v1460 = vshrl.u32 %v1459, 7
    %v1461 = vsub.s32 %v1458, %v1460
    %v1462 = vrot.slane %v1454, %v1461
    %v1464 = vunpack.c.l.s4 1934713408
    %v1465 = vunpack.c.0.s8 %v1464
    %v1466 = vlaneseq
    %v1467 = vshrl.u32 %v1466, 7
    %v1468 = vsub.s32 %v1465, %v1467
    %v1469 = vrot.slane %v1455, %v1468
    %v1470 = vcombine.low %v1445, %v1453
    %v1471 = vcombine.high %v1445, %v1453
    %v1473 = vunpack.c.l.s4 1934713408
    %v1474 = vunpack.c.0.s8 %v1473
    %v1475 = vlaneseq
    %v1476 = vshrl.u32 %v1475, 7
    %v1477 = vsub.s32 %v1474, %v1476
    %v1478 = vrot.slane %v1470, %v1477
    %v1480 = vunpack.c.l.s4 1934713408
    %v1481 = vunpack.c.0.s8 %v1480
    %v1482 = vlaneseq
    %v1483 = vshrl.u32 %v1482, 7
    %v1484 = vsub.s32 %v1481, %v1483
    %v1485 = vrot.slane %v1471, %v1484
    %v1486 = vcombine.low %v1462, %v1478
    %v1487 = vcombine.high %v1462, %v1478
    %v1488 = vcombine.low %v1469, %v1485
    %v1489 = vcombine.high %v1469, %v1485
    %1490 = vst.msk [vmem:[%s7] sm:$0xff] %vm889, %v1282
    %1491 = vst.msk [vmem:[%s7 + $0x8] sm:$0xff] %vm889, %v1350
    %1492 = vst.msk [vmem:[%s7 + $0x10] sm:$0xff] %vm889, %v1418
    %1493 = vst.msk [vmem:[%s7 + $0x18] sm:$0xff] %vm889, %v1486
    %1494 = vst.msk [vmem:[%s7 + $0x20] sm:$0xff] %vm889, %v1283
    %1495 = vst.msk [vmem:[%s7 + $0x28] sm:$0xff] %vm889, %v1351
    %1496 = vst.msk [vmem:[%s7 + $0x30] sm:$0xff] %vm889, %v1419
    %1497 = vst.msk [vmem:[%s7 + $0x38] sm:$0xff] %vm889, %v1487
    %1498 = vst.msk [vmem:[%s7 + $0x40] sm:$0xff] %vm889, %v1284
    %1499 = vst.msk [vmem:[%s7 + $0x48] sm:$0xff] %vm889, %v1352
    %1500 = vst.msk [vmem:[%s7 + $0x50] sm:$0xff] %vm889, %v1420
    %1501 = vst.msk [vmem:[%s7 + $0x58] sm:$0xff] %vm889, %v1488
    %1502 = vst.msk [vmem:[%s7 + $0x60] sm:$0xff] %vm889, %v1285
    %1503 = vst.msk [vmem:[%s7 + $0x68] sm:$0xff] %vm889, %v1353
    %1504 = vst.msk [vmem:[%s7 + $0x70] sm:$0xff] %vm889, %v1421
    %1505 = vst.msk [vmem:[%s7 + $0x78] sm:$0xff] %vm889, %v1489
    // Predicated region
    $region42: #{tpu_custom_call.1} parent=1 // pred_check
      _
    $region43: #{tpu_custom_call.1} parent=1 // pred_check_branch
      %1507 = sbr.rel (0) target = $region45
    $region44: #{tpu_custom_call.1} parent=1 // pred_region
      _
    $region45: #{tpu_custom_call.1} parent=1 // pred_fallthru
      _
    // Predicated region
    $region46: #{tpu_custom_call.1} parent=1 // pred_check
      _
    $region47: #{tpu_custom_call.1} parent=1 // pred_check_branch
      %1509 = sbr.rel (0) target = $region49
    $region48: #{tpu_custom_call.1} parent=1 // pred_region
      _
    $region49: #{tpu_custom_call.1} parent=1 // pred_fallthru
      _
    // Predicated region
    $region50: #{tpu_custom_call.1} parent=1 // pred_check
      _
    $region51: #{tpu_custom_call.1} parent=1 // pred_check_branch
      %1511 = sbr.rel (0) target = $region53
    $region52: #{tpu_custom_call.1} parent=1 // pred_region
      _
    $region53: #{tpu_custom_call.1} parent=1 // pred_fallthru
      _
    // Predicated region
    $region54: #{tpu_custom_call.1} parent=1 // pred_check
      _
    $region55: #{tpu_custom_call.1} parent=1 // pred_check_branch
      %1513 = sbr.rel (0) target = $region57
    $region56: #{tpu_custom_call.1} parent=1 // pred_region
      _
    $region57: #{tpu_custom_call.1} parent=1 // pred_fallthru
      _
    %1514 = vsyncpa [#allocation3], 1
    %1515 = vsyncpa [#allocation5], 1
    %1516 = vsyncpa [#allocation8], 1

</llo_original>
